<compile_context>
chip_gen: v7x
topology: tpu7x:2x2x1
jax: 0.10.0
libtpu: 0.0.40
codegen_flags: <defaults>
</compile_context>

<pallas_src>
import jax
import jax.numpy as jnp
from jax.experimental import pallas as pl
from jax.experimental.pallas import tpu as pltpu  # noqa: F401  (TPU backend)


def conv1x1_kernel(w_ref, x_ref, o_ref):
    # w_ref: (Cout, Cin) VMEM tile
    # x_ref: (Cin, M)    VMEM tile   (M = H*W for the current batch element)
    # o_ref: (Cout, M)   VMEM tile
    o_ref[...] = jnp.dot(
        w_ref[...], x_ref[...], preferred_element_type=jnp.float32
    ).astype(o_ref.dtype)


def conv2d_1x1(x_nchw, weight_oihw):
    """Equivalent of nn.Conv2d(Cin, Cout, kernel_size=1, stride=1, bias=False).

    x_nchw:      (N, Cin, H, W)
    weight_oihw: (Cout, Cin, 1, 1)
    returns:     (N, Cout, H, W)
    """
    N, Cin, H, W = x_nchw.shape
    Cout = weight_oihw.shape[0]
    M = H * W

    # Zero-copy reshapes (native memory order preserved).
    x_3d = x_nchw.reshape(N, Cin, M)          # (N, Cin, M)
    w_2d = weight_oihw.reshape(Cout, Cin)     # (Cout, Cin)

    itemsize = jnp.dtype(x_nchw.dtype).itemsize
    cost = pl.CostEstimate(
        flops=2 * N * M * Cin * Cout,
        transcendentals=0,
        bytes_accessed=(N * Cin * M + Cout * Cin + N * Cout * M) * itemsize,
    )

    out_3d = pl.pallas_call(
        conv1x1_kernel,
        out_shape=jax.ShapeDtypeStruct((N, Cout, M), x_nchw.dtype),
        grid=(N,),
        in_specs=[
            # Weight: resident across the (trivial) batch grid.
            pl.BlockSpec((Cout, Cin), lambda n: (0, 0)),
            # Activations: one batch element per grid step, batch dim squeezed.
            pl.BlockSpec((None, Cin, M), lambda n: (n, 0, 0)),
        ],
        out_specs=pl.BlockSpec((None, Cout, M), lambda n: (n, 0, 0)),
        cost_estimate=cost,
    )(w_2d, x_3d)

    # Zero-copy reshape back to NCHW.
    return out_3d.reshape(N, Cout, H, W)


if __name__ == "__main__":
    key = jax.random.PRNGKey(0)
    kx, kw = jax.random.split(key)

    # Shapes implied by the module's forward pass.
    N, Cin, H, W = 1, 1600, 7, 7
    Cout = 128

    x582 = jax.random.normal(kx, (N, Cin, H, W), dtype=jnp.float32)
    # Deterministic weight init (Kaiming-uniform-like scale for a 1x1 conv).
    bound = 1.0 / (Cin ** 0.5)
    weight = jax.random.uniform(
        kw, (Cout, Cin, 1, 1), dtype=jnp.float32, minval=-bound, maxval=bound
    )

    x583 = conv2d_1x1(x582, weight)
    x583 = jax.block_until_ready(x583)

    # Sanity check against a plain-JAX reference of the same 1x1 conv.
    ref = jnp.einsum("nchw,oc->nohw", x582, weight.reshape(Cout, Cin))
    assert x583.shape == (N, Cout, H, W)
    assert jnp.allclose(x583, ref, atol=1e-4, rtol=1e-4)

    print("KERNEL_OK")
</pallas_src>

<mosaic_0001>
module attributes {stable_mosaic.version = 11 : i64} {
  func.func @conv1x1_kernel(%arg0: i32, %arg1: memref<128x1600xf32, #tpu.memory_space<vmem>>, %arg2: memref<1x1600x49xf32, #tpu.memory_space<vmem>>, %arg3: memref<1x128x49xf32, #tpu.memory_space<vmem>>) attributes {dimension_semantics = [#tpu.dimension_semantics<arbitrary>], iteration_bounds = array<i64: 1>, scalar_prefetch = 0 : i64, scratch_operands = 0 : i64, tpu.core_type = #tpu.core_type<tc>, window_params = [{pipeline_mode = #tpu.pipeline_mode<synchronous>, transform_indices = @transform_0, window_bounds = array<i64: 128, 1600>}, {transform_indices = @transform_1, window_bounds = array<i64: 1, 1600, 49>}, {transform_indices = @transform_2, window_bounds = array<i64: 1, 128, 49>}]} {
    %c0 = arith.constant 0 : index
    %c0_0 = arith.constant 0 : index
    %0 = vector.load %arg1[%c0, %c0_0] : memref<128x1600xf32, #tpu.memory_space<vmem>>, vector<128x1600xf32>
    %c0_1 = arith.constant 0 : index
    %c0_2 = arith.constant 0 : index
    %c0_3 = arith.constant 0 : index
    %1 = vector.load %arg2[%c0_1, %c0_2, %c0_3] : memref<1x1600x49xf32, #tpu.memory_space<vmem>>, vector<1x1600x49xf32>
    %2 = vector.shape_cast %1 : vector<1x1600x49xf32> to vector<1600x49xf32>
    %cst = arith.constant dense<0.000000e+00> : vector<128x49xf32>
    %3 = tpu.matmul %0, %2, %cst {dimension_numbers = #tpu.dot_dimension_numbers<[1], [0], [0], [1], [0, 0, 1, 1], [], []>} : vector<128x1600xf32>, vector<1600x49xf32>, vector<128x49xf32> -> vector<128x49xf32>
    %c0_4 = arith.constant 0 : index
    %c0_5 = arith.constant 0 : index
    %c0_6 = arith.constant 0 : index
    %4 = vector.load %arg3[%c0_4, %c0_5, %c0_6] : memref<1x128x49xf32, #tpu.memory_space<vmem>>, vector<1x128x49xf32>
    %5 = vector.shape_cast %4 : vector<1x128x49xf32> to vector<128x49xf32>
    %6 = vector.shape_cast %3 : vector<128x49xf32> to vector<1x128x49xf32>
    tpu.vector_store %arg3[%c0_4, %c0_5, %c0_6], %6 {strides = array<i32>} : memref<1x128x49xf32, #tpu.memory_space<vmem>>, vector<1x128x49xf32>,
    return
  }
  func.func @transform_0(%arg0: i32) -> (i32, i32) {
    %c0_i32 = arith.constant 0 : i32
    %c0_i32_0 = arith.constant 0 : i32
    %c0_i32_1 = arith.constant 0 : i32
    return %c0_i32, %c0_i32_0 : i32, i32
  }
  func.func @transform_1(%arg0: i32) -> (i32, i32, i32) {
    %c0_i32 = arith.constant 0 : i32
    %c0_i32_0 = arith.constant 0 : i32
    %c0_i32_1 = arith.constant 0 : i32
    return %arg0, %c0_i32, %c0_i32_0 : i32, i32, i32
  }
  func.func @transform_2(%arg0: i32) -> (i32, i32, i32) {
    %c0_i32 = arith.constant 0 : i32
    %c0_i32_0 = arith.constant 0 : i32
    %c0_i32_1 = arith.constant 0 : i32
    return %arg0, %c0_i32, %c0_i32_0 : i32, i32, i32
  }
}

</mosaic_0001>

<llo_original>
// kernel: tpu_custom_call.1
$region0: #{tpu_custom_call.1}
  #allocation0 [shape = 'u32[]', space=smem, size = 0x4, offset = 0x4, fixed_abs, tag = 'smem constant byte address 0x4 - core index']
  #allocation1 [shape = 'u32[144,128]{1,0:T(1,128)}', space=vmem, size = 0x12000, scoped, tag = 'internal scratch']
  %s0 = inlined_call_operand.vmem [shape: f32[128,1600], index: 0, kind: input, shape index: {}]
  %s1 = inlined_call_operand.vmem [shape: f32[1,1600,49], index: 1, kind: input, shape index: {}]
  %s2 = inlined_call_operand.vmem [shape: f32[1,128,49], index: 2, kind: output, shape index: {}]
  %s3 = sld [smem:[#allocation0]]
  $region18: #{tpu_custom_call.1} parent=0
    _
  %s5 = ssub.s32 1, %s3
  %s6 = scalar_select 0, %s5, %s3
  // Predicated region
  $region2: #{tpu_custom_call.1} parent=0 // pred_check
    _
  $region3: #{tpu_custom_call.1} parent=0 // pred_check_branch
    %8 = sbr.rel (0) target = $region5
  $region4: #{tpu_custom_call.1} parent=0 // pred_region
    _
  $region5: #{tpu_custom_call.1} parent=0 // pred_fallthru
    _
  // Predicated region
  $region6: #{tpu_custom_call.1} parent=0 // pred_check
    _
  $region7: #{tpu_custom_call.1} parent=0 // pred_check_branch
    %10 = sbr.rel (0) target = $region9
  $region8: #{tpu_custom_call.1} parent=0 // pred_region
    _
  $region9: #{tpu_custom_call.1} parent=0 // pred_fallthru
    _
  %v11 = vld [vmem:[%s0] sm:$0xff]
  %v12 = vld [vmem:[%s0 + $0x8] sm:$0xff]
  %v13 = vld [vmem:[%s0 + $0x10] sm:$0xff]
  %v14 = vld [vmem:[%s0 + $0x18] sm:$0xff]
  %v15 = vld [vmem:[%s0 + $0x20] sm:$0xff]
  %v16 = vld [vmem:[%s0 + $0x28] sm:$0xff]
  %v17 = vld [vmem:[%s0 + $0x30] sm:$0xff]
  %v18 = vld [vmem:[%s0 + $0x38] sm:$0xff]
  %v19 = vld [vmem:[%s0 + $0x40] sm:$0xff]
  %v20 = vld [vmem:[%s0 + $0x48] sm:$0xff]
  %v21 = vld [vmem:[%s0 + $0x50] sm:$0xff]
  %v22 = vld [vmem:[%s0 + $0x58] sm:$0xff]
  %v23 = vld [vmem:[%s0 + $0x60] sm:$0xff]
  %v24 = vld [vmem:[%s0 + $0x68] sm:$0xff]
  %v25 = vld [vmem:[%s0 + $0x70] sm:$0xff]
  %v26 = vld [vmem:[%s0 + $0x78] sm:$0xff]
  %v27 = vld [vmem:[%s0 + $0x80] sm:$0xff]
  %v28 = vld [vmem:[%s0 + $0x88] sm:$0xff]
  %v29 = vld [vmem:[%s0 + $0x90] sm:$0xff]
  %v30 = vld [vmem:[%s0 + $0x98] sm:$0xff]
  %v31 = vld [vmem:[%s0 + $0xa0] sm:$0xff]
  %v32 = vld [vmem:[%s0 + $0xa8] sm:$0xff]
  %v33 = vld [vmem:[%s0 + $0xb0] sm:$0xff]
  %v34 = vld [vmem:[%s0 + $0xb8] sm:$0xff]
  %v35 = vld [vmem:[%s0 + $0xc0] sm:$0xff]
  %v36 = vld [vmem:[%s0 + $0xc8] sm:$0xff]
  %v37 = vld [vmem:[%s0 + $0xd0] sm:$0xff]
  %v38 = vld [vmem:[%s0 + $0xd8] sm:$0xff]
  %v39 = vld [vmem:[%s0 + $0xe0] sm:$0xff]
  %v40 = vld [vmem:[%s0 + $0xe8] sm:$0xff]
  %v41 = vld [vmem:[%s0 + $0xf0] sm:$0xff]
  %v42 = vld [vmem:[%s0 + $0xf8] sm:$0xff]
  %v43 = vld [vmem:[%s0 + $0x100] sm:$0xff]
  %v44 = vld [vmem:[%s0 + $0x108] sm:$0xff]
  %v45 = vld [vmem:[%s0 + $0x110] sm:$0xff]
  %v46 = vld [vmem:[%s0 + $0x118] sm:$0xff]
  %v47 = vld [vmem:[%s0 + $0x120] sm:$0xff]
  %v48 = vld [vmem:[%s0 + $0x128] sm:$0xff]
  %v49 = vld [vmem:[%s0 + $0x130] sm:$0xff]
  %v50 = vld [vmem:[%s0 + $0x138] sm:$0xff]
  %v51 = vld [vmem:[%s0 + $0x140] sm:$0xff]
  %v52 = vld [vmem:[%s0 + $0x148] sm:$0xff]
  %v53 = vld [vmem:[%s0 + $0x150] sm:$0xff]
  %v54 = vld [vmem:[%s0 + $0x158] sm:$0xff]
  %v55 = vld [vmem:[%s0 + $0x160] sm:$0xff]
  %v56 = vld [vmem:[%s0 + $0x168] sm:$0xff]
  %v57 = vld [vmem:[%s0 + $0x170] sm:$0xff]
  %v58 = vld [vmem:[%s0 + $0x178] sm:$0xff]
  %v59 = vld [vmem:[%s0 + $0x180] sm:$0xff]
  %v60 = vld [vmem:[%s0 + $0x188] sm:$0xff]
  %v61 = vld [vmem:[%s0 + $0x190] sm:$0xff]
  %v62 = vld [vmem:[%s0 + $0x198] sm:$0xff]
  %v63 = vld [vmem:[%s0 + $0x1a0] sm:$0xff]
  %v64 = vld [vmem:[%s0 + $0x1a8] sm:$0xff]
  %v65 = vld [vmem:[%s0 + $0x1b0] sm:$0xff]
  %v66 = vld [vmem:[%s0 + $0x1b8] sm:$0xff]
  %v67 = vld [vmem:[%s0 + $0x1c0] sm:$0xff]
  %v68 = vld [vmem:[%s0 + $0x1c8] sm:$0xff]
  %v69 = vld [vmem:[%s0 + $0x1d0] sm:$0xff]
  %v70 = vld [vmem:[%s0 + $0x1d8] sm:$0xff]
  %v71 = vld [vmem:[%s0 + $0x1e0] sm:$0xff]
  %v72 = vld [vmem:[%s0 + $0x1e8] sm:$0xff]
  %v73 = vld [vmem:[%s0 + $0x1f0] sm:$0xff]
  %v74 = vld [vmem:[%s0 + $0x1f8] sm:$0xff]
  %v75 = vld [vmem:[%s0 + $0x200] sm:$0xff]
  %v76 = vld [vmem:[%s0 + $0x208] sm:$0xff]
  %v77 = vld [vmem:[%s0 + $0x210] sm:$0xff]
  %v78 = vld [vmem:[%s0 + $0x218] sm:$0xff]
  %v79 = vld [vmem:[%s0 + $0x220] sm:$0xff]
  %v80 = vld [vmem:[%s0 + $0x228] sm:$0xff]
  %v81 = vld [vmem:[%s0 + $0x230] sm:$0xff]
  %v82 = vld [vmem:[%s0 + $0x238] sm:$0xff]
  %v83 = vld [vmem:[%s0 + $0x240] sm:$0xff]
  %v84 = vld [vmem:[%s0 + $0x248] sm:$0xff]
  %v85 = vld [vmem:[%s0 + $0x250] sm:$0xff]
  %v86 = vld [vmem:[%s0 + $0x258] sm:$0xff]
  %v87 = vld [vmem:[%s0 + $0x260] sm:$0xff]
  %v88 = vld [vmem:[%s0 + $0x268] sm:$0xff]
  %v89 = vld [vmem:[%s0 + $0x270] sm:$0xff]
  %v90 = vld [vmem:[%s0 + $0x278] sm:$0xff]
  %v91 = vld [vmem:[%s0 + $0x280] sm:$0xff]
  %v92 = vld [vmem:[%s0 + $0x288] sm:$0xff]
  %v93 = vld [vmem:[%s0 + $0x290] sm:$0xff]
  %v94 = vld [vmem:[%s0 + $0x298] sm:$0xff]
  %v95 = vld [vmem:[%s0 + $0x2a0] sm:$0xff]
  %v96 = vld [vmem:[%s0 + $0x2a8] sm:$0xff]
  %v97 = vld [vmem:[%s0 + $0x2b0] sm:$0xff]
  %v98 = vld [vmem:[%s0 + $0x2b8] sm:$0xff]
  %v99 = vld [vmem:[%s0 + $0x2c0] sm:$0xff]
  %v100 = vld [vmem:[%s0 + $0x2c8] sm:$0xff]
  %v101 = vld [vmem:[%s0 + $0x2d0] sm:$0xff]
  %v102 = vld [vmem:[%s0 + $0x2d8] sm:$0xff]
  %v103 = vld [vmem:[%s0 + $0x2e0] sm:$0xff]
  %v104 = vld [vmem:[%s0 + $0x2e8] sm:$0xff]
  %v105 = vld [vmem:[%s0 + $0x2f0] sm:$0xff]
  %v106 = vld [vmem:[%s0 + $0x2f8] sm:$0xff]
  %v107 = vld [vmem:[%s0 + $0x300] sm:$0xff]
  %v108 = vld [vmem:[%s0 + $0x308] sm:$0xff]
  %v109 = vld [vmem:[%s0 + $0x310] sm:$0xff]
  %v110 = vld [vmem:[%s0 + $0x318] sm:$0xff]
  %v111 = vld [vmem:[%s0 + $0x320] sm:$0xff]
  %v112 = vld [vmem:[%s0 + $0x328] sm:$0xff]
  %v113 = vld [vmem:[%s0 + $0x330] sm:$0xff]
  %v114 = vld [vmem:[%s0 + $0x338] sm:$0xff]
  %v115 = vld [vmem:[%s0 + $0x340] sm:$0xff]
  %v116 = vld [vmem:[%s0 + $0x348] sm:$0xff]
  %v117 = vld [vmem:[%s0 + $0x350] sm:$0xff]
  %v118 = vld [vmem:[%s0 + $0x358] sm:$0xff]
  %v119 = vld [vmem:[%s0 + $0x360] sm:$0xff]
  %v120 = vld [vmem:[%s0 + $0x368] sm:$0xff]
  %v121 = vld [vmem:[%s0 + $0x370] sm:$0xff]
  %v122 = vld [vmem:[%s0 + $0x378] sm:$0xff]
  %v123 = vld [vmem:[%s0 + $0x380] sm:$0xff]
  %v124 = vld [vmem:[%s0 + $0x388] sm:$0xff]
  %v125 = vld [vmem:[%s0 + $0x390] sm:$0xff]
  %v126 = vld [vmem:[%s0 + $0x398] sm:$0xff]
  %v127 = vld [vmem:[%s0 + $0x3a0] sm:$0xff]
  %v128 = vld [vmem:[%s0 + $0x3a8] sm:$0xff]
  %v129 = vld [vmem:[%s0 + $0x3b0] sm:$0xff]
  %v130 = vld [vmem:[%s0 + $0x3b8] sm:$0xff]
  %v131 = vld [vmem:[%s0 + $0x3c0] sm:$0xff]
  %v132 = vld [vmem:[%s0 + $0x3c8] sm:$0xff]
  %v133 = vld [vmem:[%s0 + $0x3d0] sm:$0xff]
  %v134 = vld [vmem:[%s0 + $0x3d8] sm:$0xff]
  %v135 = vld [vmem:[%s0 + $0x3e0] sm:$0xff]
  %v136 = vld [vmem:[%s0 + $0x3e8] sm:$0xff]
  %v137 = vld [vmem:[%s0 + $0x3f0] sm:$0xff]
  %v138 = vld [vmem:[%s0 + $0x3f8] sm:$0xff]
  %v139 = vld [vmem:[%s0 + $0x400] sm:$0xff]
  %v140 = vld [vmem:[%s0 + $0x408] sm:$0xff]
  %v141 = vld [vmem:[%s0 + $0x410] sm:$0xff]
  %v142 = vld [vmem:[%s0 + $0x418] sm:$0xff]
  %v143 = vld [vmem:[%s0 + $0x420] sm:$0xff]
  %v144 = vld [vmem:[%s0 + $0x428] sm:$0xff]
  %v145 = vld [vmem:[%s0 + $0x430] sm:$0xff]
  %v146 = vld [vmem:[%s0 + $0x438] sm:$0xff]
  %v147 = vld [vmem:[%s0 + $0x440] sm:$0xff]
  %v148 = vld [vmem:[%s0 + $0x448] sm:$0xff]
  %v149 = vld [vmem:[%s0 + $0x450] sm:$0xff]
  %v150 = vld [vmem:[%s0 + $0x458] sm:$0xff]
  %v151 = vld [vmem:[%s0 + $0x460] sm:$0xff]
  %v152 = vld [vmem:[%s0 + $0x468] sm:$0xff]
  %v153 = vld [vmem:[%s0 + $0x470] sm:$0xff]
  %v154 = vld [vmem:[%s0 + $0x478] sm:$0xff]
  %v155 = vld [vmem:[%s0 + $0x480] sm:$0xff]
  %v156 = vld [vmem:[%s0 + $0x488] sm:$0xff]
  %v157 = vld [vmem:[%s0 + $0x490] sm:$0xff]
  %v158 = vld [vmem:[%s0 + $0x498] sm:$0xff]
  %v159 = vld [vmem:[%s0 + $0x4a0] sm:$0xff]
  %v160 = vld [vmem:[%s0 + $0x4a8] sm:$0xff]
  %v161 = vld [vmem:[%s0 + $0x4b0] sm:$0xff]
  %v162 = vld [vmem:[%s0 + $0x4b8] sm:$0xff]
  %v163 = vld [vmem:[%s0 + $0x4c0] sm:$0xff]
  %v164 = vld [vmem:[%s0 + $0x4c8] sm:$0xff]
  %v165 = vld [vmem:[%s0 + $0x4d0] sm:$0xff]
  %v166 = vld [vmem:[%s0 + $0x4d8] sm:$0xff]
  %v167 = vld [vmem:[%s0 + $0x4e0] sm:$0xff]
  %v168 = vld [vmem:[%s0 + $0x4e8] sm:$0xff]
  %v169 = vld [vmem:[%s0 + $0x4f0] sm:$0xff]
  %v170 = vld [vmem:[%s0 + $0x4f8] sm:$0xff]
  %v171 = vld [vmem:[%s0 + $0x500] sm:$0xff]
  %v172 = vld [vmem:[%s0 + $0x508] sm:$0xff]
  %v173 = vld [vmem:[%s0 + $0x510] sm:$0xff]
  %v174 = vld [vmem:[%s0 + $0x518] sm:$0xff]
  %v175 = vld [vmem:[%s0 + $0x520] sm:$0xff]
  %v176 = vld [vmem:[%s0 + $0x528] sm:$0xff]
  %v177 = vld [vmem:[%s0 + $0x530] sm:$0xff]
  %v178 = vld [vmem:[%s0 + $0x538] sm:$0xff]
  %v179 = vld [vmem:[%s0 + $0x540] sm:$0xff]
  %v180 = vld [vmem:[%s0 + $0x548] sm:$0xff]
  %v181 = vld [vmem:[%s0 + $0x550] sm:$0xff]
  %v182 = vld [vmem:[%s0 + $0x558] sm:$0xff]
  %v183 = vld [vmem:[%s0 + $0x560] sm:$0xff]
  %v184 = vld [vmem:[%s0 + $0x568] sm:$0xff]
  %v185 = vld [vmem:[%s0 + $0x570] sm:$0xff]
  %v186 = vld [vmem:[%s0 + $0x578] sm:$0xff]
  %v187 = vld [vmem:[%s0 + $0x580] sm:$0xff]
  %v188 = vld [vmem:[%s0 + $0x588] sm:$0xff]
  %v189 = vld [vmem:[%s0 + $0x590] sm:$0xff]
  %v190 = vld [vmem:[%s0 + $0x598] sm:$0xff]
  %v191 = vld [vmem:[%s0 + $0x5a0] sm:$0xff]
  %v192 = vld [vmem:[%s0 + $0x5a8] sm:$0xff]
  %v193 = vld [vmem:[%s0 + $0x5b0] sm:$0xff]
  %v194 = vld [vmem:[%s0 + $0x5b8] sm:$0xff]
  %v195 = vld [vmem:[%s0 + $0x5c0] sm:$0xff]
  %v196 = vld [vmem:[%s0 + $0x5c8] sm:$0xff]
  %v197 = vld [vmem:[%s0 + $0x5d0] sm:$0xff]
  %v198 = vld [vmem:[%s0 + $0x5d8] sm:$0xff]
  %v199 = vld [vmem:[%s0 + $0x5e0] sm:$0xff]
  %v200 = vld [vmem:[%s0 + $0x5e8] sm:$0xff]
  %v201 = vld [vmem:[%s0 + $0x5f0] sm:$0xff]
  %v202 = vld [vmem:[%s0 + $0x5f8] sm:$0xff]
  %v203 = vld [vmem:[%s0 + $0x600] sm:$0xff]
  %v204 = vld [vmem:[%s0 + $0x608] sm:$0xff]
  %v205 = vld [vmem:[%s0 + $0x610] sm:$0xff]
  %v206 = vld [vmem:[%s0 + $0x618] sm:$0xff]
  %v207 = vld [vmem:[%s0 + $0x620] sm:$0xff]
  %v208 = vld [vmem:[%s0 + $0x628] sm:$0xff]
  %v209 = vld [vmem:[%s0 + $0x630] sm:$0xff]
  %v210 = vld [vmem:[%s0 + $0x638] sm:$0xff]
  %v211 = vld [vmem:[%s0 + $0x640] sm:$0xff]
  %v212 = vld [vmem:[%s0 + $0x648] sm:$0xff]
  %v213 = vld [vmem:[%s0 + $0x650] sm:$0xff]
  %v214 = vld [vmem:[%s0 + $0x658] sm:$0xff]
  %v215 = vld [vmem:[%s0 + $0x660] sm:$0xff]
  %v216 = vld [vmem:[%s0 + $0x668] sm:$0xff]
  %v217 = vld [vmem:[%s0 + $0x670] sm:$0xff]
  %v218 = vld [vmem:[%s0 + $0x678] sm:$0xff]
  %v219 = vld [vmem:[%s1] sm:$0xff]
  %v220 = vld [vmem:[%s1 + $0x8] sm:$0xff]
  %v221 = vld [vmem:[%s1 + $0x10] sm:$0xff]
  %v222 = vld [vmem:[%s1 + $0x18] sm:$0xff]
  %v223 = vld [vmem:[%s1 + $0x20] sm:$0xff]
  %v224 = vld [vmem:[%s1 + $0x28] sm:$0xff]
  %v225 = vld [vmem:[%s1 + $0x30] sm:$0xff]
  %v226 = vld [vmem:[%s1 + $0x38] sm:$0xff]
  %v227 = vld [vmem:[%s1 + $0x40] sm:$0xff]
  %v228 = vld [vmem:[%s1 + $0x48] sm:$0xff]
  %v229 = vld [vmem:[%s1 + $0x50] sm:$0xff]
  %v230 = vld [vmem:[%s1 + $0x58] sm:$0xff]
  %v231 = vld [vmem:[%s1 + $0x60] sm:$0xff]
  %v232 = vld [vmem:[%s1 + $0x68] sm:$0xff]
  %v233 = vld [vmem:[%s1 + $0x70] sm:$0xff]
  %v234 = vld [vmem:[%s1 + $0x78] sm:$0xff]
  %v235 = vld [vmem:[%s1 + $0x80] sm:$0xff]
  %v236 = vld [vmem:[%s1 + $0x88] sm:$0xff]
  %v237 = vld [vmem:[%s1 + $0x90] sm:$0xff]
  %v238 = vld [vmem:[%s1 + $0x98] sm:$0xff]
  %v239 = vld [vmem:[%s1 + $0xa0] sm:$0xff]
  %v240 = vld [vmem:[%s1 + $0xa8] sm:$0xff]
  %v241 = vld [vmem:[%s1 + $0xb0] sm:$0xff]
  %v242 = vld [vmem:[%s1 + $0xb8] sm:$0xff]
  %v243 = vld [vmem:[%s1 + $0xc0] sm:$0xff]
  %v244 = vld [vmem:[%s1 + $0xc8] sm:$0xff]
  %v245 = vld [vmem:[%s1 + $0xd0] sm:$0xff]
  %v246 = vld [vmem:[%s1 + $0xd8] sm:$0xff]
  %v247 = vld [vmem:[%s1 + $0xe0] sm:$0xff]
  %v248 = vld [vmem:[%s1 + $0xe8] sm:$0xff]
  %v249 = vld [vmem:[%s1 + $0xf0] sm:$0xff]
  %v250 = vld [vmem:[%s1 + $0xf8] sm:$0xff]
  %v251 = vld [vmem:[%s1 + $0x100] sm:$0xff]
  %v252 = vld [vmem:[%s1 + $0x108] sm:$0xff]
  %v253 = vld [vmem:[%s1 + $0x110] sm:$0xff]
  %v254 = vld [vmem:[%s1 + $0x118] sm:$0xff]
  %v255 = vld [vmem:[%s1 + $0x120] sm:$0xff]
  %v256 = vld [vmem:[%s1 + $0x128] sm:$0xff]
  %v257 = vld [vmem:[%s1 + $0x130] sm:$0xff]
  %v258 = vld [vmem:[%s1 + $0x138] sm:$0xff]
  %v259 = vld [vmem:[%s1 + $0x140] sm:$0xff]
  %v260 = vld [vmem:[%s1 + $0x148] sm:$0xff]
  %v261 = vld [vmem:[%s1 + $0x150] sm:$0xff]
  %v262 = vld [vmem:[%s1 + $0x158] sm:$0xff]
  %v263 = vld [vmem:[%s1 + $0x160] sm:$0xff]
  %v264 = vld [vmem:[%s1 + $0x168] sm:$0xff]
  %v265 = vld [vmem:[%s1 + $0x170] sm:$0xff]
  %v266 = vld [vmem:[%s1 + $0x178] sm:$0xff]
  %v267 = vld [vmem:[%s1 + $0x180] sm:$0xff]
  %v268 = vld [vmem:[%s1 + $0x188] sm:$0xff]
  %v269 = vld [vmem:[%s1 + $0x190] sm:$0xff]
  %v270 = vld [vmem:[%s1 + $0x198] sm:$0xff]
  %v271 = vld [vmem:[%s1 + $0x1a0] sm:$0xff]
  %v272 = vld [vmem:[%s1 + $0x1a8] sm:$0xff]
  %v273 = vld [vmem:[%s1 + $0x1b0] sm:$0xff]
  %v274 = vld [vmem:[%s1 + $0x1b8] sm:$0xff]
  %v275 = vld [vmem:[%s1 + $0x1c0] sm:$0xff]
  %v276 = vld [vmem:[%s1 + $0x1c8] sm:$0xff]
  %v277 = vld [vmem:[%s1 + $0x1d0] sm:$0xff]
  %v278 = vld [vmem:[%s1 + $0x1d8] sm:$0xff]
  %v279 = vld [vmem:[%s1 + $0x1e0] sm:$0xff]
  %v280 = vld [vmem:[%s1 + $0x1e8] sm:$0xff]
  %v281 = vld [vmem:[%s1 + $0x1f0] sm:$0xff]
  %v282 = vld [vmem:[%s1 + $0x1f8] sm:$0xff]
  %v283 = vld [vmem:[%s1 + $0x200] sm:$0xff]
  %v284 = vld [vmem:[%s1 + $0x208] sm:$0xff]
  %v285 = vld [vmem:[%s1 + $0x210] sm:$0xff]
  %v286 = vld [vmem:[%s1 + $0x218] sm:$0xff]
  %v287 = vld [vmem:[%s1 + $0x220] sm:$0xff]
  %v288 = vld [vmem:[%s1 + $0x228] sm:$0xff]
  %v289 = vld [vmem:[%s1 + $0x230] sm:$0xff]
  %v290 = vld [vmem:[%s1 + $0x238] sm:$0xff]
  %v291 = vld [vmem:[%s1 + $0x240] sm:$0xff]
  %v292 = vld [vmem:[%s1 + $0x248] sm:$0xff]
  %v293 = vld [vmem:[%s1 + $0x250] sm:$0xff]
  %v294 = vld [vmem:[%s1 + $0x258] sm:$0xff]
  %v295 = vld [vmem:[%s1 + $0x260] sm:$0xff]
  %v296 = vld [vmem:[%s1 + $0x268] sm:$0xff]
  %v297 = vld [vmem:[%s1 + $0x270] sm:$0xff]
  %v298 = vld [vmem:[%s1 + $0x278] sm:$0xff]
  %v299 = vld [vmem:[%s1 + $0x280] sm:$0xff]
  %v300 = vld [vmem:[%s1 + $0x288] sm:$0xff]
  %v301 = vld [vmem:[%s1 + $0x290] sm:$0xff]
  %v302 = vld [vmem:[%s1 + $0x298] sm:$0xff]
  %v303 = vld [vmem:[%s1 + $0x2a0] sm:$0xff]
  %v304 = vld [vmem:[%s1 + $0x2a8] sm:$0xff]
  %v305 = vld [vmem:[%s1 + $0x2b0] sm:$0xff]
  %v306 = vld [vmem:[%s1 + $0x2b8] sm:$0xff]
  %v307 = vld [vmem:[%s1 + $0x2c0] sm:$0xff]
  %v308 = vld [vmem:[%s1 + $0x2c8] sm:$0xff]
  %v309 = vld [vmem:[%s1 + $0x2d0] sm:$0xff]
  %v310 = vld [vmem:[%s1 + $0x2d8] sm:$0xff]
  %v311 = vld [vmem:[%s1 + $0x2e0] sm:$0xff]
  %v312 = vld [vmem:[%s1 + $0x2e8] sm:$0xff]
  %v313 = vld [vmem:[%s1 + $0x2f0] sm:$0xff]
  %v314 = vld [vmem:[%s1 + $0x2f8] sm:$0xff]
  %v315 = vld [vmem:[%s1 + $0x300] sm:$0xff]
  %v316 = vld [vmem:[%s1 + $0x308] sm:$0xff]
  %v317 = vld [vmem:[%s1 + $0x310] sm:$0xff]
  %v318 = vld [vmem:[%s1 + $0x318] sm:$0xff]
  %v319 = vld [vmem:[%s1 + $0x320] sm:$0xff]
  %v320 = vld [vmem:[%s1 + $0x328] sm:$0xff]
  %v321 = vld [vmem:[%s1 + $0x330] sm:$0xff]
  %v322 = vld [vmem:[%s1 + $0x338] sm:$0xff]
  %v323 = vld [vmem:[%s1 + $0x340] sm:$0xff]
  %v324 = vld [vmem:[%s1 + $0x348] sm:$0xff]
  %v325 = vld [vmem:[%s1 + $0x350] sm:$0xff]
  %v326 = vld [vmem:[%s1 + $0x358] sm:$0xff]
  %v327 = vld [vmem:[%s1 + $0x360] sm:$0xff]
  %v328 = vld [vmem:[%s1 + $0x368] sm:$0xff]
  %v329 = vld [vmem:[%s1 + $0x370] sm:$0xff]
  %v330 = vld [vmem:[%s1 + $0x378] sm:$0xff]
  %v331 = vld [vmem:[%s1 + $0x380] sm:$0xff]
  %v332 = vld [vmem:[%s1 + $0x388] sm:$0xff]
  %v333 = vld [vmem:[%s1 + $0x390] sm:$0xff]
  %v334 = vld [vmem:[%s1 + $0x398] sm:$0xff]
  %v335 = vld [vmem:[%s1 + $0x3a0] sm:$0xff]
  %v336 = vld [vmem:[%s1 + $0x3a8] sm:$0xff]
  %v337 = vld [vmem:[%s1 + $0x3b0] sm:$0xff]
  %v338 = vld [vmem:[%s1 + $0x3b8] sm:$0xff]
  %v339 = vld [vmem:[%s1 + $0x3c0] sm:$0xff]
  %v340 = vld [vmem:[%s1 + $0x3c8] sm:$0xff]
  %v341 = vld [vmem:[%s1 + $0x3d0] sm:$0xff]
  %v342 = vld [vmem:[%s1 + $0x3d8] sm:$0xff]
  %v343 = vld [vmem:[%s1 + $0x3e0] sm:$0xff]
  %v344 = vld [vmem:[%s1 + $0x3e8] sm:$0xff]
  %v345 = vld [vmem:[%s1 + $0x3f0] sm:$0xff]
  %v346 = vld [vmem:[%s1 + $0x3f8] sm:$0xff]
  %v347 = vld [vmem:[%s1 + $0x400] sm:$0xff]
  %v348 = vld [vmem:[%s1 + $0x408] sm:$0xff]
  %v349 = vld [vmem:[%s1 + $0x410] sm:$0xff]
  %v350 = vld [vmem:[%s1 + $0x418] sm:$0xff]
  %v351 = vld [vmem:[%s1 + $0x420] sm:$0xff]
  %v352 = vld [vmem:[%s1 + $0x428] sm:$0xff]
  %v353 = vld [vmem:[%s1 + $0x430] sm:$0xff]
  %v354 = vld [vmem:[%s1 + $0x438] sm:$0xff]
  %v355 = vld [vmem:[%s1 + $0x440] sm:$0xff]
  %v356 = vld [vmem:[%s1 + $0x448] sm:$0xff]
  %v357 = vld [vmem:[%s1 + $0x450] sm:$0xff]
  %v358 = vld [vmem:[%s1 + $0x458] sm:$0xff]
  %v359 = vld [vmem:[%s1 + $0x460] sm:$0xff]
  %v360 = vld [vmem:[%s1 + $0x468] sm:$0xff]
  %v361 = vld [vmem:[%s1 + $0x470] sm:$0xff]
  %v362 = vld [vmem:[%s1 + $0x478] sm:$0xff]
  %v363 = vld [vmem:[%s1 + $0x480] sm:$0xff]
  %v364 = vld [vmem:[%s1 + $0x488] sm:$0xff]
  %v365 = vld [vmem:[%s1 + $0x490] sm:$0xff]
  %v366 = vld [vmem:[%s1 + $0x498] sm:$0xff]
  %v367 = vld [vmem:[%s1 + $0x4a0] sm:$0xff]
  %v368 = vld [vmem:[%s1 + $0x4a8] sm:$0xff]
  %v369 = vld [vmem:[%s1 + $0x4b0] sm:$0xff]
  %v370 = vld [vmem:[%s1 + $0x4b8] sm:$0xff]
  %v371 = vld [vmem:[%s1 + $0x4c0] sm:$0xff]
  %v372 = vld [vmem:[%s1 + $0x4c8] sm:$0xff]
  %v373 = vld [vmem:[%s1 + $0x4d0] sm:$0xff]
  %v374 = vld [vmem:[%s1 + $0x4d8] sm:$0xff]
  %v375 = vld [vmem:[%s1 + $0x4e0] sm:$0xff]
  %v376 = vld [vmem:[%s1 + $0x4e8] sm:$0xff]
  %v377 = vld [vmem:[%s1 + $0x4f0] sm:$0xff]
  %v378 = vld [vmem:[%s1 + $0x4f8] sm:$0xff]
  %v379 = vld [vmem:[%s1 + $0x500] sm:$0xff]
  %v380 = vld [vmem:[%s1 + $0x508] sm:$0xff]
  %v381 = vld [vmem:[%s1 + $0x510] sm:$0xff]
  %v382 = vld [vmem:[%s1 + $0x518] sm:$0xff]
  %v383 = vld [vmem:[%s1 + $0x520] sm:$0xff]
  %v384 = vld [vmem:[%s1 + $0x528] sm:$0xff]
  %v385 = vld [vmem:[%s1 + $0x530] sm:$0xff]
  %v386 = vld [vmem:[%s1 + $0x538] sm:$0xff]
  %v387 = vld [vmem:[%s1 + $0x540] sm:$0xff]
  %v388 = vld [vmem:[%s1 + $0x548] sm:$0xff]
  %v389 = vld [vmem:[%s1 + $0x550] sm:$0xff]
  %v390 = vld [vmem:[%s1 + $0x558] sm:$0xff]
  %v391 = vld [vmem:[%s1 + $0x560] sm:$0xff]
  %v392 = vld [vmem:[%s1 + $0x568] sm:$0xff]
  %v393 = vld [vmem:[%s1 + $0x570] sm:$0xff]
  %v394 = vld [vmem:[%s1 + $0x578] sm:$0xff]
  %v395 = vld [vmem:[%s1 + $0x580] sm:$0xff]
  %v396 = vld [vmem:[%s1 + $0x588] sm:$0xff]
  %v397 = vld [vmem:[%s1 + $0x590] sm:$0xff]
  %v398 = vld [vmem:[%s1 + $0x598] sm:$0xff]
  %v399 = vld [vmem:[%s1 + $0x5a0] sm:$0xff]
  %v400 = vld [vmem:[%s1 + $0x5a8] sm:$0xff]
  %v401 = vld [vmem:[%s1 + $0x5b0] sm:$0xff]
  %v402 = vld [vmem:[%s1 + $0x5b8] sm:$0xff]
  %v403 = vld [vmem:[%s1 + $0x5c0] sm:$0xff]
  %v404 = vld [vmem:[%s1 + $0x5c8] sm:$0xff]
  %v405 = vld [vmem:[%s1 + $0x5d0] sm:$0xff]
  %v406 = vld [vmem:[%s1 + $0x5d8] sm:$0xff]
  %v407 = vld [vmem:[%s1 + $0x5e0] sm:$0xff]
  %v408 = vld [vmem:[%s1 + $0x5e8] sm:$0xff]
  %v409 = vld [vmem:[%s1 + $0x5f0] sm:$0xff]
  %v410 = vld [vmem:[%s1 + $0x5f8] sm:$0xff]
  %v411 = vld [vmem:[%s1 + $0x600] sm:$0xff]
  %v412 = vld [vmem:[%s1 + $0x608] sm:$0xff]
  %v413 = vld [vmem:[%s1 + $0x610] sm:$0xff]
  %v414 = vld [vmem:[%s1 + $0x618] sm:$0xff]
  %v415 = vld [vmem:[%s1 + $0x620] sm:$0xff]
  %v416 = vld [vmem:[%s1 + $0x628] sm:$0xff]
  %v417 = vld [vmem:[%s1 + $0x630] sm:$0xff]
  %v418 = vld [vmem:[%s1 + $0x638] sm:$0xff]
  %vm419 = vcmask 523264
  %v421 = vsel %vm419, %v23, 0
  %v424 = vsel %vm419, %v36, 0
  %v427 = vsel %vm419, %v49, 0
  %v430 = vsel %vm419, %v62, 0
  %v433 = vsel %vm419, %v75, 0
  %v436 = vsel %vm419, %v88, 0
  %v439 = vsel %vm419, %v101, 0
  %v442 = vsel %vm419, %v114, 0
  %v445 = vsel %vm419, %v127, 0
  %v448 = vsel %vm419, %v140, 0
  %v451 = vsel %vm419, %v153, 0
  %v454 = vsel %vm419, %v166, 0
  %v457 = vsel %vm419, %v179, 0
  %v460 = vsel %vm419, %v192, 0
  %v463 = vsel %vm419, %v205, 0
  %v466 = vsel %vm419, %v218, 0
  %468 = vmatprep.subr.mxu0 0.0
  %469 = vmatpush1.msra.mxu0 %v219
  %470 = vmatprep.subr.mxu0 0.0
  %471 = vmatpush1.msra.mxu0 %v220
  %472 = vmatprep.subr.mxu0 0.0
  %473 = vmatpush1.msra.mxu0 %v221
  %474 = vmatprep.subr.mxu0 0.0
  %475 = vmatpush1.msra.mxu0 %v222
  %476 = vmatprep.subr.mxu0 0.0
  %477 = vmatpush1.msra.mxu0 %v223
  %478 = vmatprep.subr.mxu0 0.0
  %479 = vmatpush1.msra.mxu0 %v224
  %480 = vmatprep.subr.mxu0 0.0
  %481 = vmatpush1.msra.mxu0 %v225
  %482 = vmatprep.subr.mxu0 0.0
  %483 = vmatpush1.msra.mxu0 %v226
  %484 = vmatprep.subr.mxu0 0.0
  %485 = vmatpush1.msra.mxu0 %v227
  %486 = vmatprep.subr.mxu0 0.0
  %487 = vmatpush1.msra.mxu0 %v228
  %488 = vmatprep.subr.mxu0 0.0
  %489 = vmatpush1.msra.mxu0 %v229
  %490 = vmatprep.subr.mxu0 0.0
  %491 = vmatpush1.msra.mxu0 %v230
  %492 = vmatprep.subr.mxu0 0.0
  %493 = vmatpush1.msra.mxu0 %v231
  %494 = vmatprep.subr.mxu0 0.0
  %495 = vmatpush1.msra.mxu0 %v232
  %496 = vmatprep.subr.mxu0 0.0
  %497 = vmatpush1.msra.mxu0 %v233
  %498 = vmatprep.subr.mxu0 0.0
  %499 = vmatpush1.msra.mxu0 %v234
  %500 = vmatprep.subr.mxu0 0.0
  %501 = vmatpush1.msra.mxu0 %v235
  %502 = vmatprep.subr.mxu0 0.0
  %503 = vmatpush1.msra.mxu0 %v236
  %504 = vmatprep.subr.mxu0 0.0
  %505 = vmatpush1.msra.mxu0 %v237
  %506 = vmatprep.subr.mxu0 0.0
  %507 = vmatpush1.msra.mxu0 %v238
  %508 = vmatprep.subr.mxu0 0.0
  %509 = vmatpush1.msra.mxu0 %v239
  %510 = vmatprep.subr.mxu0 0.0
  %511 = vmatpush1.msra.mxu0 %v240
  %512 = vmatprep.subr.mxu0 0.0
  %513 = vmatpush1.msra.mxu0 %v241
  %514 = vmatprep.subr.mxu0 0.0
  %515 = vmatpush1.msra.mxu0 %v242
  %516 = vmatprep.subr.mxu0 0.0
  %517 = vmatpush1.msra.mxu0 %v243
  %518 = vmatprep.subr.mxu0 0.0
  %519 = vmatpush1.msra.mxu0 %v244
  %520 = vmatprep.subr.mxu0 0.0
  %521 = vmatpush1.msra.mxu0 %v245
  %522 = vmatprep.subr.mxu0 0.0
  %523 = vmatpush1.msra.mxu0 %v246
  %524 = vmatprep.subr.mxu0 0.0
  %525 = vmatpush1.msra.mxu0 %v247
  %526 = vmatprep.subr.mxu0 0.0
  %527 = vmatpush1.msra.mxu0 %v248
  %528 = vmatprep.subr.mxu0 0.0
  %529 = vmatpush1.msra.mxu0 %v249
  %530 = vmatprep.subr.mxu0 0.0
  %531 = vmatpush1.msra.mxu0 %v250
  %532 = vmatprep.mubr.f32.mxu0 %v12
  %533 = vmatmul.mubr.f32.gmra.mrb[0].mxu0 %v11
  %v534 = vpop.f32.mrb[0].mxu0
  %v535 = vadd.f32 0.0, %v534
  %v536 = vpop.f32.mrb[0].mxu0
  %537 = vmatprep.mubr.f32.mxu0 %v25
  %538 = vmatmul.mubr.f32.gmra.mrb[0].mxu0 %v24
  %v539 = vpop.f32.mrb[0].mxu0
  %v540 = vadd.f32 0.0, %v539
  %v541 = vpop.f32.mrb[0].mxu0
  %542 = vmatprep.mubr.f32.mxu0 %v38
  %543 = vmatmul.mubr.f32.gmra.mrb[0].mxu0 %v37
  %v544 = vpop.f32.mrb[0].mxu0
  %v545 = vadd.f32 0.0, %v544
  %v546 = vpop.f32.mrb[0].mxu0
  %547 = vmatprep.mubr.f32.mxu0 %v51
  %548 = vmatmul.mubr.f32.gmra.mrb[0].mxu0 %v50
  %v549 = vpop.f32.mrb[0].mxu0
  %v550 = vadd.f32 0.0, %v549
  %v551 = vpop.f32.mrb[0].mxu0
  %552 = vmatprep.mubr.f32.mxu0 %v64
  %553 = vmatmul.mubr.f32.gmra.mrb[0].mxu0 %v63
  %v554 = vpop.f32.mrb[0].mxu0
  %v555 = vadd.f32 0.0, %v554
  %v556 = vpop.f32.mrb[0].mxu0
  %557 = vmatprep.mubr.f32.mxu0 %v77
  %558 = vmatmul.mubr.f32.gmra.mrb[0].mxu0 %v76
  %v559 = vpop.f32.mrb[0].mxu0
  %v560 = vadd.f32 0.0, %v559
  %v561 = vpop.f32.mrb[0].mxu0
  %562 = vmatprep.mubr.f32.mxu0 %v90
  %563 = vmatmul.mubr.f32.gmra.mrb[0].mxu0 %v89
  %v564 = vpop.f32.mrb[0].mxu0
  %v565 = vadd.f32 0.0, %v564
  %v566 = vpop.f32.mrb[0].mxu0
  %567 = vmatprep.mubr.f32.mxu0 %v103
  %568 = vmatmul.mubr.f32.gmra.mrb[0].mxu0 %v102
  %v569 = vpop.f32.mrb[0].mxu0
  %v570 = vadd.f32 0.0, %v569
  %v571 = vpop.f32.mrb[0].mxu0
  %572 = vmatprep.mubr.f32.mxu0 %v116
  %573 = vmatmul.mubr.f32.gmra.mrb[0].mxu0 %v115
  %v574 = vpop.f32.mrb[0].mxu0
  %v575 = vadd.f32 0.0, %v574
  %v576 = vpop.f32.mrb[0].mxu0
  %577 = vmatprep.mubr.f32.mxu0 %v129
  %578 = vmatmul.mubr.f32.gmra.mrb[0].mxu0 %v128
  %v579 = vpop.f32.mrb[0].mxu0
  %v580 = vadd.f32 0.0, %v579
  %v581 = vpop.f32.mrb[0].mxu0
  %582 = vmatprep.mubr.f32.mxu0 %v142
  %583 = vmatmul.mubr.f32.gmra.mrb[0].mxu0 %v141
  %v584 = vpop.f32.mrb[0].mxu0
  %v585 = vadd.f32 0.0, %v584
  %v586 = vpop.f32.mrb[0].mxu0
  %587 = vmatprep.mubr.f32.mxu0 %v155
  %588 = vmatmul.mubr.f32.gmra.mrb[0].mxu0 %v154
  %v589 = vpop.f32.mrb[0].mxu0
  %v590 = vadd.f32 0.0, %v589
  %v591 = vpop.f32.mrb[0].mxu0
  %592 = vmatprep.mubr.f32.mxu0 %v168
  %593 = vmatmul.mubr.f32.gmra.mrb[0].mxu0 %v167
  %v594 = vpop.f32.mrb[0].mxu0
  %v595 = vadd.f32 0.0, %v594
  %v596 = vpop.f32.mrb[0].mxu0
  %597 = vmatprep.mubr.f32.mxu0 %v181
  %598 = vmatmul.mubr.f32.gmra.mrb[0].mxu0 %v180
  %v599 = vpop.f32.mrb[0].mxu0
  %v600 = vadd.f32 0.0, %v599
  %v601 = vpop.f32.mrb[0].mxu0
  %602 = vmatprep.mubr.f32.mxu0 %v194
  %603 = vmatmul.mubr.f32.gmra.mrb[0].mxu0 %v193
  %v604 = vpop.f32.mrb[0].mxu0
  %v605 = vadd.f32 0.0, %v604
  %v606 = vpop.f32.mrb[0].mxu0
  %607 = vmatprep.mubr.f32.mxu0 %v207
  %608 = vmatmul.mubr.f32.gmra.mrb[0].mxu0 %v206
  %v609 = vpop.f32.mrb[0].mxu0
  %v610 = vadd.f32 0.0, %v609
  %v611 = vpop.f32.mrb[0].mxu0
  %612 = vdwg.mxu0
  %613 = vmatprep.subr.mxu0 0.0
  %614 = vmatpush1.msra.mxu0 %v251
  %615 = vmatprep.subr.mxu0 0.0
  %616 = vmatpush1.msra.mxu0 %v252
  %617 = vmatprep.subr.mxu0 0.0
  %618 = vmatpush1.msra.mxu0 %v253
  %619 = vmatprep.subr.mxu0 0.0
  %620 = vmatpush1.msra.mxu0 %v254
  %621 = vmatprep.subr.mxu0 0.0
  %622 = vmatpush1.msra.mxu0 %v255
  %623 = vmatprep.subr.mxu0 0.0
  %624 = vmatpush1.msra.mxu0 %v256
  %625 = vmatprep.subr.mxu0 0.0
  %626 = vmatpush1.msra.mxu0 %v257
  %627 = vmatprep.subr.mxu0 0.0
  %628 = vmatpush1.msra.mxu0 %v258
  %629 = vmatprep.subr.mxu0 0.0
  %630 = vmatpush1.msra.mxu0 %v259
  %631 = vmatprep.subr.mxu0 0.0
  %632 = vmatpush1.msra.mxu0 %v260
  %633 = vmatprep.subr.mxu0 0.0
  %634 = vmatpush1.msra.mxu0 %v261
  %635 = vmatprep.subr.mxu0 0.0
  %636 = vmatpush1.msra.mxu0 %v262
  %637 = vmatprep.subr.mxu0 0.0
  %638 = vmatpush1.msra.mxu0 %v263
  %639 = vmatprep.subr.mxu0 0.0
  %640 = vmatpush1.msra.mxu0 %v264
  %641 = vmatprep.subr.mxu0 0.0
  %642 = vmatpush1.msra.mxu0 %v265
  %643 = vmatprep.subr.mxu0 0.0
  %644 = vmatpush1.msra.mxu0 %v266
  %645 = vmatprep.subr.mxu0 0.0
  %646 = vmatpush1.msra.mxu0 %v267
  %647 = vmatprep.subr.mxu0 0.0
  %648 = vmatpush1.msra.mxu0 %v268
  %649 = vmatprep.subr.mxu0 0.0
  %650 = vmatpush1.msra.mxu0 %v269
  %651 = vmatprep.subr.mxu0 0.0
  %652 = vmatpush1.msra.mxu0 %v270
  %653 = vmatprep.subr.mxu0 0.0
  %654 = vmatpush1.msra.mxu0 %v271
  %655 = vmatprep.subr.mxu0 0.0
  %656 = vmatpush1.msra.mxu0 %v272
  %657 = vmatprep.subr.mxu0 0.0
  %658 = vmatpush1.msra.mxu0 %v273
  %659 = vmatprep.subr.mxu0 0.0
  %660 = vmatpush1.msra.mxu0 %v274
  %661 = vmatprep.subr.mxu0 0.0
  %662 = vmatpush1.msra.mxu0 %v275
  %663 = vmatprep.subr.mxu0 0.0
  %664 = vmatpush1.msra.mxu0 %v276
  %665 = vmatprep.subr.mxu0 0.0
  %666 = vmatpush1.msra.mxu0 %v277
  %667 = vmatprep.subr.mxu0 0.0
  %668 = vmatpush1.msra.mxu0 %v278
  %669 = vmatprep.subr.mxu0 0.0
  %670 = vmatpush1.msra.mxu0 %v279
  %671 = vmatprep.subr.mxu0 0.0
  %672 = vmatpush1.msra.mxu0 %v280
  %673 = vmatprep.subr.mxu0 0.0
  %674 = vmatpush1.msra.mxu0 %v281
  %675 = vmatprep.subr.mxu0 0.0
  %676 = vmatpush1.msra.mxu0 %v282
  %677 = vmatprep.mubr.f32.mxu0 %v14
  %678 = vmatmul.mubr.f32.gmra.mrb[0].mxu0 %v13
  %v679 = vpop.f32.mrb[0].mxu0
  %v680 = vadd.f32 %v535, %v679
  %v681 = vpop.f32.mrb[0].mxu0
  %682 = vmatprep.mubr.f32.mxu0 %v27
  %683 = vmatmul.mubr.f32.gmra.mrb[0].mxu0 %v26
  %v684 = vpop.f32.mrb[0].mxu0
  %v685 = vadd.f32 %v540, %v684
  %v686 = vpop.f32.mrb[0].mxu0
  %687 = vmatprep.mubr.f32.mxu0 %v40
  %688 = vmatmul.mubr.f32.gmra.mrb[0].mxu0 %v39
  %v689 = vpop.f32.mrb[0].mxu0
  %v690 = vadd.f32 %v545, %v689
  %v691 = vpop.f32.mrb[0].mxu0
  %692 = vmatprep.mubr.f32.mxu0 %v53
  %693 = vmatmul.mubr.f32.gmra.mrb[0].mxu0 %v52
  %v694 = vpop.f32.mrb[0].mxu0
  %v695 = vadd.f32 %v550, %v694
  %v696 = vpop.f32.mrb[0].mxu0
  %697 = vmatprep.mubr.f32.mxu0 %v66
  %698 = vmatmul.mubr.f32.gmra.mrb[0].mxu0 %v65
  %v699 = vpop.f32.mrb[0].mxu0
  %v700 = vadd.f32 %v555, %v699
  %v701 = vpop.f32.mrb[0].mxu0
  %702 = vmatprep.mubr.f32.mxu0 %v79
  %703 = vmatmul.mubr.f32.gmra.mrb[0].mxu0 %v78
  %v704 = vpop.f32.mrb[0].mxu0
  %v705 = vadd.f32 %v560, %v704
  %v706 = vpop.f32.mrb[0].mxu0
  %707 = vmatprep.mubr.f32.mxu0 %v92
  %708 = vmatmul.mubr.f32.gmra.mrb[0].mxu0 %v91
  %v709 = vpop.f32.mrb[0].mxu0
  %v710 = vadd.f32 %v565, %v709
  %v711 = vpop.f32.mrb[0].mxu0
  %712 = vmatprep.mubr.f32.mxu0 %v105
  %713 = vmatmul.mubr.f32.gmra.mrb[0].mxu0 %v104
  %v714 = vpop.f32.mrb[0].mxu0
  %v715 = vadd.f32 %v570, %v714
  %v716 = vpop.f32.mrb[0].mxu0
  %717 = vmatprep.mubr.f32.mxu0 %v118
  %718 = vmatmul.mubr.f32.gmra.mrb[0].mxu0 %v117
  %v719 = vpop.f32.mrb[0].mxu0
  %v720 = vadd.f32 %v575, %v719
  %v721 = vpop.f32.mrb[0].mxu0
  %722 = vmatprep.mubr.f32.mxu0 %v131
  %723 = vmatmul.mubr.f32.gmra.mrb[0].mxu0 %v130
  %v724 = vpop.f32.mrb[0].mxu0
  %v725 = vadd.f32 %v580, %v724
  %v726 = vpop.f32.mrb[0].mxu0
  %727 = vmatprep.mubr.f32.mxu0 %v144
  %728 = vmatmul.mubr.f32.gmra.mrb[0].mxu0 %v143
  %v729 = vpop.f32.mrb[0].mxu0
  %v730 = vadd.f32 %v585, %v729
  %v731 = vpop.f32.mrb[0].mxu0
  %732 = vmatprep.mubr.f32.mxu0 %v157
  %733 = vmatmul.mubr.f32.gmra.mrb[0].mxu0 %v156
  %v734 = vpop.f32.mrb[0].mxu0
  %v735 = vadd.f32 %v590, %v734
  %v736 = vpop.f32.mrb[0].mxu0
  %737 = vmatprep.mubr.f32.mxu0 %v170
  %738 = vmatmul.mubr.f32.gmra.mrb[0].mxu0 %v169
  %v739 = vpop.f32.mrb[0].mxu0
  %v740 = vadd.f32 %v595, %v739
  %v741 = vpop.f32.mrb[0].mxu0
  %742 = vmatprep.mubr.f32.mxu0 %v183
  %743 = vmatmul.mubr.f32.gmra.mrb[0].mxu0 %v182
  %v744 = vpop.f32.mrb[0].mxu0
  %v745 = vadd.f32 %v600, %v744
  %v746 = vpop.f32.mrb[0].mxu0
  %747 = vmatprep.mubr.f32.mxu0 %v196
  %748 = vmatmul.mubr.f32.gmra.mrb[0].mxu0 %v195
  %v749 = vpop.f32.mrb[0].mxu0
  %v750 = vadd.f32 %v605, %v749
  %v751 = vpop.f32.mrb[0].mxu0
  %752 = vmatprep.mubr.f32.mxu0 %v209
  %753 = vmatmul.mubr.f32.gmra.mrb[0].mxu0 %v208
  %v754 = vpop.f32.mrb[0].mxu0
  %v755 = vadd.f32 %v610, %v754
  %v756 = vpop.f32.mrb[0].mxu0
  %757 = vdwg.mxu0
  %758 = vmatprep.subr.mxu0 0.0
  %759 = vmatpush1.msra.mxu0 %v283
  %760 = vmatprep.subr.mxu0 0.0
  %761 = vmatpush1.msra.mxu0 %v284
  %762 = vmatprep.subr.mxu0 0.0
  %763 = vmatpush1.msra.mxu0 %v285
  %764 = vmatprep.subr.mxu0 0.0
  %765 = vmatpush1.msra.mxu0 %v286
  %766 = vmatprep.subr.mxu0 0.0
  %767 = vmatpush1.msra.mxu0 %v287
  %768 = vmatprep.subr.mxu0 0.0
  %769 = vmatpush1.msra.mxu0 %v288
  %770 = vmatprep.subr.mxu0 0.0
  %771 = vmatpush1.msra.mxu0 %v289
  %772 = vmatprep.subr.mxu0 0.0
  %773 = vmatpush1.msra.mxu0 %v290
  %774 = vmatprep.subr.mxu0 0.0
  %775 = vmatpush1.msra.mxu0 %v291
  %776 = vmatprep.subr.mxu0 0.0
  %777 = vmatpush1.msra.mxu0 %v292
  %778 = vmatprep.subr.mxu0 0.0
  %779 = vmatpush1.msra.mxu0 %v293
  %780 = vmatprep.subr.mxu0 0.0
  %781 = vmatpush1.msra.mxu0 %v294
  %782 = vmatprep.subr.mxu0 0.0
  %783 = vmatpush1.msra.mxu0 %v295
  %784 = vmatprep.subr.mxu0 0.0
  %785 = vmatpush1.msra.mxu0 %v296
  %786 = vmatprep.subr.mxu0 0.0
  %787 = vmatpush1.msra.mxu0 %v297
  %788 = vmatprep.subr.mxu0 0.0
  %789 = vmatpush1.msra.mxu0 %v298
  %790 = vmatprep.subr.mxu0 0.0
  %791 = vmatpush1.msra.mxu0 %v299
  %792 = vmatprep.subr.mxu0 0.0
  %793 = vmatpush1.msra.mxu0 %v300
  %794 = vmatprep.subr.mxu0 0.0
  %795 = vmatpush1.msra.mxu0 %v301
  %796 = vmatprep.subr.mxu0 0.0
  %797 = vmatpush1.msra.mxu0 %v302
  %798 = vmatprep.subr.mxu0 0.0
  %799 = vmatpush1.msra.mxu0 %v303
  %800 = vmatprep.subr.mxu0 0.0
  %801 = vmatpush1.msra.mxu0 %v304
  %802 = vmatprep.subr.mxu0 0.0
  %803 = vmatpush1.msra.mxu0 %v305
  %804 = vmatprep.subr.mxu0 0.0
  %805 = vmatpush1.msra.mxu0 %v306
  %806 = vmatprep.subr.mxu0 0.0
  %807 = vmatpush1.msra.mxu0 %v307
  %808 = vmatprep.subr.mxu0 0.0
  %809 = vmatpush1.msra.mxu0 %v308
  %810 = vmatprep.subr.mxu0 0.0
  %811 = vmatpush1.msra.mxu0 %v309
  %812 = vmatprep.subr.mxu0 0.0
  %813 = vmatpush1.msra.mxu0 %v310
  %814 = vmatprep.subr.mxu0 0.0
  %815 = vmatpush1.msra.mxu0 %v311
  %816 = vmatprep.subr.mxu0 0.0
  %817 = vmatpush1.msra.mxu0 %v312
  %818 = vmatprep.subr.mxu0 0.0
  %819 = vmatpush1.msra.mxu0 %v313
  %820 = vmatprep.subr.mxu0 0.0
  %821 = vmatpush1.msra.mxu0 %v314
  %822 = vmatprep.mubr.f32.mxu0 %v16
  %823 = vmatmul.mubr.f32.gmra.mrb[0].mxu0 %v15
  %v824 = vpop.f32.mrb[0].mxu0
  %v825 = vadd.f32 %v680, %v824
  %v826 = vpop.f32.mrb[0].mxu0
  %827 = vmatprep.mubr.f32.mxu0 %v29
  %828 = vmatmul.mubr.f32.gmra.mrb[0].mxu0 %v28
  %v829 = vpop.f32.mrb[0].mxu0
  %v830 = vadd.f32 %v685, %v829
  %v831 = vpop.f32.mrb[0].mxu0
  %832 = vmatprep.mubr.f32.mxu0 %v42
  %833 = vmatmul.mubr.f32.gmra.mrb[0].mxu0 %v41
  %v834 = vpop.f32.mrb[0].mxu0
  %v835 = vadd.f32 %v690, %v834
  %v836 = vpop.f32.mrb[0].mxu0
  %837 = vmatprep.mubr.f32.mxu0 %v55
  %838 = vmatmul.mubr.f32.gmra.mrb[0].mxu0 %v54
  %v839 = vpop.f32.mrb[0].mxu0
  %v840 = vadd.f32 %v695, %v839
  %v841 = vpop.f32.mrb[0].mxu0
  %842 = vmatprep.mubr.f32.mxu0 %v68
  %843 = vmatmul.mubr.f32.gmra.mrb[0].mxu0 %v67
  %v844 = vpop.f32.mrb[0].mxu0
  %v845 = vadd.f32 %v700, %v844
  %v846 = vpop.f32.mrb[0].mxu0
  %847 = vmatprep.mubr.f32.mxu0 %v81
  %848 = vmatmul.mubr.f32.gmra.mrb[0].mxu0 %v80
  %v849 = vpop.f32.mrb[0].mxu0
  %v850 = vadd.f32 %v705, %v849
  %v851 = vpop.f32.mrb[0].mxu0
  %852 = vmatprep.mubr.f32.mxu0 %v94
  %853 = vmatmul.mubr.f32.gmra.mrb[0].mxu0 %v93
  %v854 = vpop.f32.mrb[0].mxu0
  %v855 = vadd.f32 %v710, %v854
  %v856 = vpop.f32.mrb[0].mxu0
  %857 = vmatprep.mubr.f32.mxu0 %v107
  %858 = vmatmul.mubr.f32.gmra.mrb[0].mxu0 %v106
  %v859 = vpop.f32.mrb[0].mxu0
  %v860 = vadd.f32 %v715, %v859
  %v861 = vpop.f32.mrb[0].mxu0
  %862 = vmatprep.mubr.f32.mxu0 %v120
  %863 = vmatmul.mubr.f32.gmra.mrb[0].mxu0 %v119
  %v864 = vpop.f32.mrb[0].mxu0
  %v865 = vadd.f32 %v720, %v864
  %v866 = vpop.f32.mrb[0].mxu0
  %867 = vmatprep.mubr.f32.mxu0 %v133
  %868 = vmatmul.mubr.f32.gmra.mrb[0].mxu0 %v132
  %v869 = vpop.f32.mrb[0].mxu0
  %v870 = vadd.f32 %v725, %v869
  %v871 = vpop.f32.mrb[0].mxu0
  %872 = vmatprep.mubr.f32.mxu0 %v146
  %873 = vmatmul.mubr.f32.gmra.mrb[0].mxu0 %v145
  %v874 = vpop.f32.mrb[0].mxu0
  %v875 = vadd.f32 %v730, %v874
  %v876 = vpop.f32.mrb[0].mxu0
  %877 = vmatprep.mubr.f32.mxu0 %v159
  %878 = vmatmul.mubr.f32.gmra.mrb[0].mxu0 %v158
  %v879 = vpop.f32.mrb[0].mxu0
  %v880 = vadd.f32 %v735, %v879
  %v881 = vpop.f32.mrb[0].mxu0
  %882 = vmatprep.mubr.f32.mxu0 %v172
  %883 = vmatmul.mubr.f32.gmra.mrb[0].mxu0 %v171
  %v884 = vpop.f32.mrb[0].mxu0
  %v885 = vadd.f32 %v740, %v884
  %v886 = vpop.f32.mrb[0].mxu0
  %887 = vmatprep.mubr.f32.mxu0 %v185
  %888 = vmatmul.mubr.f32.gmra.mrb[0].mxu0 %v184
  %v889 = vpop.f32.mrb[0].mxu0
  %v890 = vadd.f32 %v745, %v889
  %v891 = vpop.f32.mrb[0].mxu0
  %892 = vmatprep.mubr.f32.mxu0 %v198
  %893 = vmatmul.mubr.f32.gmra.mrb[0].mxu0 %v197
  %v894 = vpop.f32.mrb[0].mxu0
  %v895 = vadd.f32 %v750, %v894
  %v896 = vpop.f32.mrb[0].mxu0
  %897 = vmatprep.mubr.f32.mxu0 %v211
  %898 = vmatmul.mubr.f32.gmra.mrb[0].mxu0 %v210
  %v899 = vpop.f32.mrb[0].mxu0
  %v900 = vadd.f32 %v755, %v899
  %v901 = vpop.f32.mrb[0].mxu0
  %902 = vdwg.mxu0
  %903 = vmatprep.subr.mxu0 0.0
  %904 = vmatpush1.msra.mxu0 %v315
  %905 = vmatprep.subr.mxu0 0.0
  %906 = vmatpush1.msra.mxu0 %v316
  %907 = vmatprep.subr.mxu0 0.0
  %908 = vmatpush1.msra.mxu0 %v317
  %909 = vmatprep.subr.mxu0 0.0
  %910 = vmatpush1.msra.mxu0 %v318
  %911 = vmatprep.subr.mxu0 0.0
  %912 = vmatpush1.msra.mxu0 %v319
  %913 = vmatprep.subr.mxu0 0.0
  %914 = vmatpush1.msra.mxu0 %v320
  %915 = vmatprep.subr.mxu0 0.0
  %916 = vmatpush1.msra.mxu0 %v321
  %917 = vmatprep.subr.mxu0 0.0
  %918 = vmatpush1.msra.mxu0 %v322
  %919 = vmatprep.subr.mxu0 0.0
  %920 = vmatpush1.msra.mxu0 %v323
  %921 = vmatprep.subr.mxu0 0.0
  %922 = vmatpush1.msra.mxu0 %v324
  %923 = vmatprep.subr.mxu0 0.0
  %924 = vmatpush1.msra.mxu0 %v325
  %925 = vmatprep.subr.mxu0 0.0
  %926 = vmatpush1.msra.mxu0 %v326
  %927 = vmatprep.subr.mxu0 0.0
  %928 = vmatpush1.msra.mxu0 %v327
  %929 = vmatprep.subr.mxu0 0.0
  %930 = vmatpush1.msra.mxu0 %v328
  %931 = vmatprep.subr.mxu0 0.0
  %932 = vmatpush1.msra.mxu0 %v329
  %933 = vmatprep.subr.mxu0 0.0
  %934 = vmatpush1.msra.mxu0 %v330
  %935 = vmatprep.subr.mxu0 0.0
  %936 = vmatpush1.msra.mxu0 %v331
  %937 = vmatprep.subr.mxu0 0.0
  %938 = vmatpush1.msra.mxu0 %v332
  %939 = vmatprep.subr.mxu0 0.0
  %940 = vmatpush1.msra.mxu0 %v333
  %941 = vmatprep.subr.mxu0 0.0
  %942 = vmatpush1.msra.mxu0 %v334
  %943 = vmatprep.subr.mxu0 0.0
  %944 = vmatpush1.msra.mxu0 %v335
  %945 = vmatprep.subr.mxu0 0.0
  %946 = vmatpush1.msra.mxu0 %v336
  %947 = vmatprep.subr.mxu0 0.0
  %948 = vmatpush1.msra.mxu0 %v337
  %949 = vmatprep.subr.mxu0 0.0
  %950 = vmatpush1.msra.mxu0 %v338
  %951 = vmatprep.subr.mxu0 0.0
  %952 = vmatpush1.msra.mxu0 %v339
  %953 = vmatprep.subr.mxu0 0.0
  %954 = vmatpush1.msra.mxu0 %v340
  %955 = vmatprep.subr.mxu0 0.0
  %956 = vmatpush1.msra.mxu0 %v341
  %957 = vmatprep.subr.mxu0 0.0
  %958 = vmatpush1.msra.mxu0 %v342
  %959 = vmatprep.subr.mxu0 0.0
  %960 = vmatpush1.msra.mxu0 %v343
  %961 = vmatprep.subr.mxu0 0.0
  %962 = vmatpush1.msra.mxu0 %v344
  %963 = vmatprep.subr.mxu0 0.0
  %964 = vmatpush1.msra.mxu0 %v345
  %965 = vmatprep.subr.mxu0 0.0
  %966 = vmatpush1.msra.mxu0 %v346
  %967 = vmatprep.mubr.f32.mxu0 %v18
  %968 = vmatmul.mubr.f32.gmra.mrb[0].mxu0 %v17
  %v969 = vpop.f32.mrb[0].mxu0
  %v970 = vadd.f32 %v825, %v969
  %v971 = vpop.f32.mrb[0].mxu0
  %972 = vmatprep.mubr.f32.mxu0 %v31
  %973 = vmatmul.mubr.f32.gmra.mrb[0].mxu0 %v30
  %v974 = vpop.f32.mrb[0].mxu0
  %v975 = vadd.f32 %v830, %v974
  %v976 = vpop.f32.mrb[0].mxu0
  %977 = vmatprep.mubr.f32.mxu0 %v44
  %978 = vmatmul.mubr.f32.gmra.mrb[0].mxu0 %v43
  %v979 = vpop.f32.mrb[0].mxu0
  %v980 = vadd.f32 %v835, %v979
  %v981 = vpop.f32.mrb[0].mxu0
  %982 = vmatprep.mubr.f32.mxu0 %v57
  %983 = vmatmul.mubr.f32.gmra.mrb[0].mxu0 %v56
  %v984 = vpop.f32.mrb[0].mxu0
  %v985 = vadd.f32 %v840, %v984
  %v986 = vpop.f32.mrb[0].mxu0
  %987 = vmatprep.mubr.f32.mxu0 %v70
  %988 = vmatmul.mubr.f32.gmra.mrb[0].mxu0 %v69
  %v989 = vpop.f32.mrb[0].mxu0
  %v990 = vadd.f32 %v845, %v989
  %v991 = vpop.f32.mrb[0].mxu0
  %992 = vmatprep.mubr.f32.mxu0 %v83
  %993 = vmatmul.mubr.f32.gmra.mrb[0].mxu0 %v82
  %v994 = vpop.f32.mrb[0].mxu0
  %v995 = vadd.f32 %v850, %v994
  %v996 = vpop.f32.mrb[0].mxu0
  %997 = vmatprep.mubr.f32.mxu0 %v96
  %998 = vmatmul.mubr.f32.gmra.mrb[0].mxu0 %v95
  %v999 = vpop.f32.mrb[0].mxu0
  %v1000 = vadd.f32 %v855, %v999
  %v1001 = vpop.f32.mrb[0].mxu0
  %1002 = vmatprep.mubr.f32.mxu0 %v109
  %1003 = vmatmul.mubr.f32.gmra.mrb[0].mxu0 %v108
  %v1004 = vpop.f32.mrb[0].mxu0
  %v1005 = vadd.f32 %v860, %v1004
  %v1006 = vpop.f32.mrb[0].mxu0
  %1007 = vmatprep.mubr.f32.mxu0 %v122
  %1008 = vmatmul.mubr.f32.gmra.mrb[0].mxu0 %v121
  %v1009 = vpop.f32.mrb[0].mxu0
  %v1010 = vadd.f32 %v865, %v1009
  %v1011 = vpop.f32.mrb[0].mxu0
  %1012 = vmatprep.mubr.f32.mxu0 %v135
  %1013 = vmatmul.mubr.f32.gmra.mrb[0].mxu0 %v134
  %v1014 = vpop.f32.mrb[0].mxu0
  %v1015 = vadd.f32 %v870, %v1014
  %v1016 = vpop.f32.mrb[0].mxu0
  %1017 = vmatprep.mubr.f32.mxu0 %v148
  %1018 = vmatmul.mubr.f32.gmra.mrb[0].mxu0 %v147
  %v1019 = vpop.f32.mrb[0].mxu0
  %v1020 = vadd.f32 %v875, %v1019
  %v1021 = vpop.f32.mrb[0].mxu0
  %1022 = vmatprep.mubr.f32.mxu0 %v161
  %1023 = vmatmul.mubr.f32.gmra.mrb[0].mxu0 %v160
  %v1024 = vpop.f32.mrb[0].mxu0
  %v1025 = vadd.f32 %v880, %v1024
  %v1026 = vpop.f32.mrb[0].mxu0
  %1027 = vmatprep.mubr.f32.mxu0 %v174
  %1028 = vmatmul.mubr.f32.gmra.mrb[0].mxu0 %v173
  %v1029 = vpop.f32.mrb[0].mxu0
  %v1030 = vadd.f32 %v885, %v1029
  %v1031 = vpop.f32.mrb[0].mxu0
  %1032 = vmatprep.mubr.f32.mxu0 %v187
  %1033 = vmatmul.mubr.f32.gmra.mrb[0].mxu0 %v186
  %v1034 = vpop.f32.mrb[0].mxu0
  %v1035 = vadd.f32 %v890, %v1034
  %v1036 = vpop.f32.mrb[0].mxu0
  %1037 = vmatprep.mubr.f32.mxu0 %v200
  %1038 = vmatmul.mubr.f32.gmra.mrb[0].mxu0 %v199
  %v1039 = vpop.f32.mrb[0].mxu0
  %v1040 = vadd.f32 %v895, %v1039
  %v1041 = vpop.f32.mrb[0].mxu0
  %1042 = vmatprep.mubr.f32.mxu0 %v213
  %1043 = vmatmul.mubr.f32.gmra.mrb[0].mxu0 %v212
  %v1044 = vpop.f32.mrb[0].mxu0
  %v1045 = vadd.f32 %v900, %v1044
  %v1046 = vpop.f32.mrb[0].mxu0
  %1047 = vdwg.mxu0
  %1048 = vmatprep.subr.mxu0 0.0
  %1049 = vmatpush1.msra.mxu0 %v347
  %1050 = vmatprep.subr.mxu0 0.0
  %1051 = vmatpush1.msra.mxu0 %v348
  %1052 = vmatprep.subr.mxu0 0.0
  %1053 = vmatpush1.msra.mxu0 %v349
  %1054 = vmatprep.subr.mxu0 0.0
  %1055 = vmatpush1.msra.mxu0 %v350
  %1056 = vmatprep.subr.mxu0 0.0
  %1057 = vmatpush1.msra.mxu0 %v351
  %1058 = vmatprep.subr.mxu0 0.0
  %1059 = vmatpush1.msra.mxu0 %v352
  %1060 = vmatprep.subr.mxu0 0.0
  %1061 = vmatpush1.msra.mxu0 %v353
  %1062 = vmatprep.subr.mxu0 0.0
  %1063 = vmatpush1.msra.mxu0 %v354
  %1064 = vmatprep.subr.mxu0 0.0
  %1065 = vmatpush1.msra.mxu0 %v355
  %1066 = vmatprep.subr.mxu0 0.0
  %1067 = vmatpush1.msra.mxu0 %v356
  %1068 = vmatprep.subr.mxu0 0.0
  %1069 = vmatpush1.msra.mxu0 %v357
  %1070 = vmatprep.subr.mxu0 0.0
  %1071 = vmatpush1.msra.mxu0 %v358
  %1072 = vmatprep.subr.mxu0 0.0
  %1073 = vmatpush1.msra.mxu0 %v359
  %1074 = vmatprep.subr.mxu0 0.0
  %1075 = vmatpush1.msra.mxu0 %v360
  %1076 = vmatprep.subr.mxu0 0.0
  %1077 = vmatpush1.msra.mxu0 %v361
  %1078 = vmatprep.subr.mxu0 0.0
  %1079 = vmatpush1.msra.mxu0 %v362
  %1080 = vmatprep.subr.mxu0 0.0
  %1081 = vmatpush1.msra.mxu0 %v363
  %1082 = vmatprep.subr.mxu0 0.0
  %1083 = vmatpush1.msra.mxu0 %v364
  %1084 = vmatprep.subr.mxu0 0.0
  %1085 = vmatpush1.msra.mxu0 %v365
  %1086 = vmatprep.subr.mxu0 0.0
  %1087 = vmatpush1.msra.mxu0 %v366
  %1088 = vmatprep.subr.mxu0 0.0
  %1089 = vmatpush1.msra.mxu0 %v367
  %1090 = vmatprep.subr.mxu0 0.0
  %1091 = vmatpush1.msra.mxu0 %v368
  %1092 = vmatprep.subr.mxu0 0.0
  %1093 = vmatpush1.msra.mxu0 %v369
  %1094 = vmatprep.subr.mxu0 0.0
  %1095 = vmatpush1.msra.mxu0 %v370
  %1096 = vmatprep.subr.mxu0 0.0
  %1097 = vmatpush1.msra.mxu0 %v371
  %1098 = vmatprep.subr.mxu0 0.0
  %1099 = vmatpush1.msra.mxu0 %v372
  %1100 = vmatprep.subr.mxu0 0.0
  %1101 = vmatpush1.msra.mxu0 %v373
  %1102 = vmatprep.subr.mxu0 0.0
  %1103 = vmatpush1.msra.mxu0 %v374
  %1104 = vmatprep.subr.mxu0 0.0
  %1105 = vmatpush1.msra.mxu0 %v375
  %1106 = vmatprep.subr.mxu0 0.0
  %1107 = vmatpush1.msra.mxu0 %v376
  %1108 = vmatprep.subr.mxu0 0.0
  %1109 = vmatpush1.msra.mxu0 %v377
  %1110 = vmatprep.subr.mxu0 0.0
  %1111 = vmatpush1.msra.mxu0 %v378
  %1112 = vmatprep.mubr.f32.mxu0 %v20
  %1113 = vmatmul.mubr.f32.gmra.mrb[0].mxu0 %v19
  %v1114 = vpop.f32.mrb[0].mxu0
  %v1115 = vadd.f32 %v970, %v1114
  %v1116 = vpop.f32.mrb[0].mxu0
  %1117 = vmatprep.mubr.f32.mxu0 %v33
  %1118 = vmatmul.mubr.f32.gmra.mrb[0].mxu0 %v32
  %v1119 = vpop.f32.mrb[0].mxu0
  %v1120 = vadd.f32 %v975, %v1119
  %v1121 = vpop.f32.mrb[0].mxu0
  %1122 = vmatprep.mubr.f32.mxu0 %v46
  %1123 = vmatmul.mubr.f32.gmra.mrb[0].mxu0 %v45
  %v1124 = vpop.f32.mrb[0].mxu0
  %v1125 = vadd.f32 %v980, %v1124
  %v1126 = vpop.f32.mrb[0].mxu0
  %1127 = vmatprep.mubr.f32.mxu0 %v59
  %1128 = vmatmul.mubr.f32.gmra.mrb[0].mxu0 %v58
  %v1129 = vpop.f32.mrb[0].mxu0
  %v1130 = vadd.f32 %v985, %v1129
  %v1131 = vpop.f32.mrb[0].mxu0
  %1132 = vmatprep.mubr.f32.mxu0 %v72
  %1133 = vmatmul.mubr.f32.gmra.mrb[0].mxu0 %v71
  %v1134 = vpop.f32.mrb[0].mxu0
  %v1135 = vadd.f32 %v990, %v1134
  %v1136 = vpop.f32.mrb[0].mxu0
  %1137 = vmatprep.mubr.f32.mxu0 %v85
  %1138 = vmatmul.mubr.f32.gmra.mrb[0].mxu0 %v84
  %v1139 = vpop.f32.mrb[0].mxu0
  %v1140 = vadd.f32 %v995, %v1139
  %v1141 = vpop.f32.mrb[0].mxu0
  %1142 = vmatprep.mubr.f32.mxu0 %v98
  %1143 = vmatmul.mubr.f32.gmra.mrb[0].mxu0 %v97
  %v1144 = vpop.f32.mrb[0].mxu0
  %v1145 = vadd.f32 %v1000, %v1144
  %v1146 = vpop.f32.mrb[0].mxu0
  %1147 = vmatprep.mubr.f32.mxu0 %v111
  %1148 = vmatmul.mubr.f32.gmra.mrb[0].mxu0 %v110
  %v1149 = vpop.f32.mrb[0].mxu0
  %v1150 = vadd.f32 %v1005, %v1149
  %v1151 = vpop.f32.mrb[0].mxu0
  %1152 = vmatprep.mubr.f32.mxu0 %v124
  %1153 = vmatmul.mubr.f32.gmra.mrb[0].mxu0 %v123
  %v1154 = vpop.f32.mrb[0].mxu0
  %v1155 = vadd.f32 %v1010, %v1154
  %v1156 = vpop.f32.mrb[0].mxu0
  %1157 = vmatprep.mubr.f32.mxu0 %v137
  %1158 = vmatmul.mubr.f32.gmra.mrb[0].mxu0 %v136
  %v1159 = vpop.f32.mrb[0].mxu0
  %v1160 = vadd.f32 %v1015, %v1159
  %v1161 = vpop.f32.mrb[0].mxu0
  %1162 = vmatprep.mubr.f32.mxu0 %v150
  %1163 = vmatmul.mubr.f32.gmra.mrb[0].mxu0 %v149
  %v1164 = vpop.f32.mrb[0].mxu0
  %v1165 = vadd.f32 %v1020, %v1164
  %v1166 = vpop.f32.mrb[0].mxu0
  %1167 = vmatprep.mubr.f32.mxu0 %v163
  %1168 = vmatmul.mubr.f32.gmra.mrb[0].mxu0 %v162
  %v1169 = vpop.f32.mrb[0].mxu0
  %v1170 = vadd.f32 %v1025, %v1169
  %v1171 = vpop.f32.mrb[0].mxu0
  %1172 = vmatprep.mubr.f32.mxu0 %v176
  %1173 = vmatmul.mubr.f32.gmra.mrb[0].mxu0 %v175
  %v1174 = vpop.f32.mrb[0].mxu0
  %v1175 = vadd.f32 %v1030, %v1174
  %v1176 = vpop.f32.mrb[0].mxu0
  %1177 = vmatprep.mubr.f32.mxu0 %v189
  %1178 = vmatmul.mubr.f32.gmra.mrb[0].mxu0 %v188
  %v1179 = vpop.f32.mrb[0].mxu0
  %v1180 = vadd.f32 %v1035, %v1179
  %v1181 = vpop.f32.mrb[0].mxu0
  %1182 = vmatprep.mubr.f32.mxu0 %v202
  %1183 = vmatmul.mubr.f32.gmra.mrb[0].mxu0 %v201
  %v1184 = vpop.f32.mrb[0].mxu0
  %v1185 = vadd.f32 %v1040, %v1184
  %v1186 = vpop.f32.mrb[0].mxu0
  %1187 = vmatprep.mubr.f32.mxu0 %v215
  %1188 = vmatmul.mubr.f32.gmra.mrb[0].mxu0 %v214
  %v1189 = vpop.f32.mrb[0].mxu0
  %v1190 = vadd.f32 %v1045, %v1189
  %v1191 = vpop.f32.mrb[0].mxu0
  %1192 = vdwg.mxu0
  %1193 = vmatprep.subr.mxu0 0.0
  %1194 = vmatpush1.msra.mxu0 %v379
  %1195 = vmatprep.subr.mxu0 0.0
  %1196 = vmatpush1.msra.mxu0 %v380
  %1197 = vmatprep.subr.mxu0 0.0
  %1198 = vmatpush1.msra.mxu0 %v381
  %1199 = vmatprep.subr.mxu0 0.0
  %1200 = vmatpush1.msra.mxu0 %v382
  %1201 = vmatprep.subr.mxu0 0.0
  %1202 = vmatpush1.msra.mxu0 %v383
  %1203 = vmatprep.subr.mxu0 0.0
  %1204 = vmatpush1.msra.mxu0 %v384
  %1205 = vmatprep.subr.mxu0 0.0
  %1206 = vmatpush1.msra.mxu0 %v385
  %1207 = vmatprep.subr.mxu0 0.0
  %1208 = vmatpush1.msra.mxu0 %v386
  %1209 = vmatprep.subr.mxu0 0.0
  %1210 = vmatpush1.msra.mxu0 %v387
  %1211 = vmatprep.subr.mxu0 0.0
  %1212 = vmatpush1.msra.mxu0 %v388
  %1213 = vmatprep.subr.mxu0 0.0
  %1214 = vmatpush1.msra.mxu0 %v389
  %1215 = vmatprep.subr.mxu0 0.0
  %1216 = vmatpush1.msra.mxu0 %v390
  %1217 = vmatprep.subr.mxu0 0.0
  %1218 = vmatpush1.msra.mxu0 %v391
  %1219 = vmatprep.subr.mxu0 0.0
  %1220 = vmatpush1.msra.mxu0 %v392
  %1221 = vmatprep.subr.mxu0 0.0
  %1222 = vmatpush1.msra.mxu0 %v393
  %1223 = vmatprep.subr.mxu0 0.0
  %1224 = vmatpush1.msra.mxu0 %v394
  %1225 = vmatprep.subr.mxu0 0.0
  %1226 = vmatpush1.msra.mxu0 %v395
  %1227 = vmatprep.subr.mxu0 0.0
  %1228 = vmatpush1.msra.mxu0 %v396
  %1229 = vmatprep.subr.mxu0 0.0
  %1230 = vmatpush1.msra.mxu0 %v397
  %1231 = vmatprep.subr.mxu0 0.0
  %1232 = vmatpush1.msra.mxu0 %v398
  %1233 = vmatprep.subr.mxu0 0.0
  %1234 = vmatpush1.msra.mxu0 %v399
  %1235 = vmatprep.subr.mxu0 0.0
  %1236 = vmatpush1.msra.mxu0 %v400
  %1237 = vmatprep.subr.mxu0 0.0
  %1238 = vmatpush1.msra.mxu0 %v401
  %1239 = vmatprep.subr.mxu0 0.0
  %1240 = vmatpush1.msra.mxu0 %v402
  %1241 = vmatprep.subr.mxu0 0.0
  %1242 = vmatpush1.msra.mxu0 %v403
  %1243 = vmatprep.subr.mxu0 0.0
  %1244 = vmatpush1.msra.mxu0 %v404
  %1245 = vmatprep.subr.mxu0 0.0
  %1246 = vmatpush1.msra.mxu0 %v405
  %1247 = vmatprep.subr.mxu0 0.0
  %1248 = vmatpush1.msra.mxu0 %v406
  %1249 = vmatprep.subr.mxu0 0.0
  %1250 = vmatpush1.msra.mxu0 %v407
  %1251 = vmatprep.subr.mxu0 0.0
  %1252 = vmatpush1.msra.mxu0 %v408
  %1253 = vmatprep.subr.mxu0 0.0
  %1254 = vmatpush1.msra.mxu0 %v409
  %1255 = vmatprep.subr.mxu0 0.0
  %1256 = vmatpush1.msra.mxu0 %v410
  %1257 = vmatprep.mubr.f32.mxu0 %v22
  %1258 = vmatmul.mubr.f32.gmra.mrb[0].mxu0 %v21
  %v1259 = vpop.f32.mrb[0].mxu0
  %v1260 = vadd.f32 %v1115, %v1259
  %v1261 = vpop.f32.mrb[0].mxu0
  %1262 = vmatprep.mubr.f32.mxu0 %v35
  %1263 = vmatmul.mubr.f32.gmra.mrb[0].mxu0 %v34
  %v1264 = vpop.f32.mrb[0].mxu0
  %v1265 = vadd.f32 %v1120, %v1264
  %v1266 = vpop.f32.mrb[0].mxu0
  %1267 = vmatprep.mubr.f32.mxu0 %v48
  %1268 = vmatmul.mubr.f32.gmra.mrb[0].mxu0 %v47
  %v1269 = vpop.f32.mrb[0].mxu0
  %v1270 = vadd.f32 %v1125, %v1269
  %v1271 = vpop.f32.mrb[0].mxu0
  %1272 = vmatprep.mubr.f32.mxu0 %v61
  %1273 = vmatmul.mubr.f32.gmra.mrb[0].mxu0 %v60
  %v1274 = vpop.f32.mrb[0].mxu0
  %v1275 = vadd.f32 %v1130, %v1274
  %v1276 = vpop.f32.mrb[0].mxu0
  %1277 = vmatprep.mubr.f32.mxu0 %v74
  %1278 = vmatmul.mubr.f32.gmra.mrb[0].mxu0 %v73
  %v1279 = vpop.f32.mrb[0].mxu0
  %v1280 = vadd.f32 %v1135, %v1279
  %v1281 = vpop.f32.mrb[0].mxu0
  %1282 = vmatprep.mubr.f32.mxu0 %v87
  %1283 = vmatmul.mubr.f32.gmra.mrb[0].mxu0 %v86
  %v1284 = vpop.f32.mrb[0].mxu0
  %v1285 = vadd.f32 %v1140, %v1284
  %v1286 = vpop.f32.mrb[0].mxu0
  %1287 = vmatprep.mubr.f32.mxu0 %v100
  %1288 = vmatmul.mubr.f32.gmra.mrb[0].mxu0 %v99
  %v1289 = vpop.f32.mrb[0].mxu0
  %v1290 = vadd.f32 %v1145, %v1289
  %v1291 = vpop.f32.mrb[0].mxu0
  %1292 = vmatprep.mubr.f32.mxu0 %v113
  %1293 = vmatmul.mubr.f32.gmra.mrb[0].mxu0 %v112
  %v1294 = vpop.f32.mrb[0].mxu0
  %v1295 = vadd.f32 %v1150, %v1294
  %v1296 = vpop.f32.mrb[0].mxu0
  %1297 = vmatprep.mubr.f32.mxu0 %v126
  %1298 = vmatmul.mubr.f32.gmra.mrb[0].mxu0 %v125
  %v1299 = vpop.f32.mrb[0].mxu0
  %v1300 = vadd.f32 %v1155, %v1299
  %v1301 = vpop.f32.mrb[0].mxu0
  %1302 = vmatprep.mubr.f32.mxu0 %v139
  %1303 = vmatmul.mubr.f32.gmra.mrb[0].mxu0 %v138
  %v1304 = vpop.f32.mrb[0].mxu0
  %v1305 = vadd.f32 %v1160, %v1304
  %v1306 = vpop.f32.mrb[0].mxu0
  %1307 = vmatprep.mubr.f32.mxu0 %v152
  %1308 = vmatmul.mubr.f32.gmra.mrb[0].mxu0 %v151
  %v1309 = vpop.f32.mrb[0].mxu0
  %v1310 = vadd.f32 %v1165, %v1309
  %v1311 = vpop.f32.mrb[0].mxu0
  %1312 = vmatprep.mubr.f32.mxu0 %v165
  %1313 = vmatmul.mubr.f32.gmra.mrb[0].mxu0 %v164
  %v1314 = vpop.f32.mrb[0].mxu0
  %v1315 = vadd.f32 %v1170, %v1314
  %v1316 = vpop.f32.mrb[0].mxu0
  %1317 = vmatprep.mubr.f32.mxu0 %v178
  %1318 = vmatmul.mubr.f32.gmra.mrb[0].mxu0 %v177
  %v1319 = vpop.f32.mrb[0].mxu0
  %v1320 = vadd.f32 %v1175, %v1319
  %v1321 = vpop.f32.mrb[0].mxu0
  %1322 = vmatprep.mubr.f32.mxu0 %v191
  %1323 = vmatmul.mubr.f32.gmra.mrb[0].mxu0 %v190
  %v1324 = vpop.f32.mrb[0].mxu0
  %v1325 = vadd.f32 %v1180, %v1324
  %v1326 = vpop.f32.mrb[0].mxu0
  %1327 = vmatprep.mubr.f32.mxu0 %v204
  %1328 = vmatmul.mubr.f32.gmra.mrb[0].mxu0 %v203
  %v1329 = vpop.f32.mrb[0].mxu0
  %v1330 = vadd.f32 %v1185, %v1329
  %v1331 = vpop.f32.mrb[0].mxu0
  %1332 = vmatprep.mubr.f32.mxu0 %v217
  %1333 = vmatmul.mubr.f32.gmra.mrb[0].mxu0 %v216
  %v1334 = vpop.f32.mrb[0].mxu0
  %v1335 = vadd.f32 %v1190, %v1334
  %v1336 = vpop.f32.mrb[0].mxu0
  %1337 = vdwg.mxu0
  %1338 = vmatprep.subr.mxu0 0.0
  %1339 = vmatpush1.msra.mxu0 %v411
  %1340 = vmatprep.subr.mxu0 0.0
  %1341 = vmatpush1.msra.mxu0 %v412
  %1342 = vmatprep.subr.mxu0 0.0
  %1343 = vmatpush1.msra.mxu0 %v413
  %1344 = vmatprep.subr.mxu0 0.0
  %1345 = vmatpush1.msra.mxu0 %v414
  %1346 = vmatprep.subr.mxu0 0.0
  %1347 = vmatpush1.msra.mxu0 %v415
  %1348 = vmatprep.subr.mxu0 0.0
  %1349 = vmatpush1.msra.mxu0 %v416
  %1350 = vmatprep.subr.mxu0 0.0
  %1351 = vmatpush1.msra.mxu0 %v417
  %1352 = vmatprep.subr.mxu0 0.0
  %1353 = vmatpush1.msra.mxu0 %v418
  %1354 = vmatprep.subr.mxu0 0.0
  %1355 = vmatpush1.msra.mxu0 0.0
  %1356 = vmatprep.subr.mxu0 0.0
  %1357 = vmatpush1.msra.mxu0 0.0
  %1358 = vmatprep.subr.mxu0 0.0
  %1359 = vmatpush1.msra.mxu0 0.0
  %1360 = vmatprep.subr.mxu0 0.0
  %1361 = vmatpush1.msra.mxu0 0.0
  %1362 = vmatprep.subr.mxu0 0.0
  %1363 = vmatpush1.msra.mxu0 0.0
  %1364 = vmatprep.subr.mxu0 0.0
  %1365 = vmatpush1.msra.mxu0 0.0
  %1366 = vmatprep.subr.mxu0 0.0
  %1367 = vmatpush1.msra.mxu0 0.0
  %1368 = vmatprep.subr.mxu0 0.0
  %1369 = vmatpush1.msra.mxu0 0.0
  %1370 = vmatprep.subr.mxu0 0.0
  %1371 = vmatpush1.msra.mxu0 0.0
  %1372 = vmatprep.subr.mxu0 0.0
  %1373 = vmatpush1.msra.mxu0 0.0
  %1374 = vmatprep.subr.mxu0 0.0
  %1375 = vmatpush1.msra.mxu0 0.0
  %1376 = vmatprep.subr.mxu0 0.0
  %1377 = vmatpush1.msra.mxu0 0.0
  %1378 = vmatprep.subr.mxu0 0.0
  %1379 = vmatpush1.msra.mxu0 0.0
  %1380 = vmatprep.subr.mxu0 0.0
  %1381 = vmatpush1.msra.mxu0 0.0
  %1382 = vmatprep.subr.mxu0 0.0
  %1383 = vmatpush1.msra.mxu0 0.0
  %1384 = vmatprep.subr.mxu0 0.0
  %1385 = vmatpush1.msra.mxu0 0.0
  %1386 = vmatprep.subr.mxu0 0.0
  %1387 = vmatpush1.msra.mxu0 0.0
  %1388 = vmatprep.subr.mxu0 0.0
  %1389 = vmatpush1.msra.mxu0 0.0
  %1390 = vmatprep.subr.mxu0 0.0
  %1391 = vmatpush1.msra.mxu0 0.0
  %1392 = vmatprep.subr.mxu0 0.0
  %1393 = vmatpush1.msra.mxu0 0.0
  %1394 = vmatprep.subr.mxu0 0.0
  %1395 = vmatpush1.msra.mxu0 0.0
  %1396 = vmatprep.subr.mxu0 0.0
  %1397 = vmatpush1.msra.mxu0 0.0
  %1398 = vmatprep.subr.mxu0 0.0
  %1399 = vmatpush1.msra.mxu0 0.0
  %1400 = vmatprep.subr.mxu0 0.0
  %1401 = vmatpush1.msra.mxu0 0.0
  %1402 = vmatprep.mubr.f32.mxu0 0.0
  %1403 = vmatmul.mubr.f32.gmra.mrb[0].mxu0 %v421
  %v1404 = vpop.f32.mrb[0].mxu0
  %v1405 = vadd.f32 %v1260, %v1404
  %v1406 = vpop.f32.mrb[0].mxu0
  %1407 = vmatprep.mubr.f32.mxu0 0.0
  %1408 = vmatmul.mubr.f32.gmra.mrb[0].mxu0 %v424
  %v1409 = vpop.f32.mrb[0].mxu0
  %v1410 = vadd.f32 %v1265, %v1409
  %v1411 = vpop.f32.mrb[0].mxu0
  %1412 = vmatprep.mubr.f32.mxu0 0.0
  %1413 = vmatmul.mubr.f32.gmra.mrb[0].mxu0 %v427
  %v1414 = vpop.f32.mrb[0].mxu0
  %v1415 = vadd.f32 %v1270, %v1414
  %v1416 = vpop.f32.mrb[0].mxu0
  %1417 = vmatprep.mubr.f32.mxu0 0.0
  %1418 = vmatmul.mubr.f32.gmra.mrb[0].mxu0 %v430
  %v1419 = vpop.f32.mrb[0].mxu0
  %v1420 = vadd.f32 %v1275, %v1419
  %v1421 = vpop.f32.mrb[0].mxu0
  %1422 = vmatprep.mubr.f32.mxu0 0.0
  %1423 = vmatmul.mubr.f32.gmra.mrb[0].mxu0 %v433
  %v1424 = vpop.f32.mrb[0].mxu0
  %v1425 = vadd.f32 %v1280, %v1424
  %v1426 = vpop.f32.mrb[0].mxu0
  %1427 = vmatprep.mubr.f32.mxu0 0.0
  %1428 = vmatmul.mubr.f32.gmra.mrb[0].mxu0 %v436
  %v1429 = vpop.f32.mrb[0].mxu0
  %v1430 = vadd.f32 %v1285, %v1429
  %v1431 = vpop.f32.mrb[0].mxu0
  %1432 = vmatprep.mubr.f32.mxu0 0.0
  %1433 = vmatmul.mubr.f32.gmra.mrb[0].mxu0 %v439
  %v1434 = vpop.f32.mrb[0].mxu0
  %v1435 = vadd.f32 %v1290, %v1434
  %v1436 = vpop.f32.mrb[0].mxu0
  %1437 = vmatprep.mubr.f32.mxu0 0.0
  %1438 = vmatmul.mubr.f32.gmra.mrb[0].mxu0 %v442
  %v1439 = vpop.f32.mrb[0].mxu0
  %v1440 = vadd.f32 %v1295, %v1439
  %v1441 = vpop.f32.mrb[0].mxu0
  %1442 = vmatprep.mubr.f32.mxu0 0.0
  %1443 = vmatmul.mubr.f32.gmra.mrb[0].mxu0 %v445
  %v1444 = vpop.f32.mrb[0].mxu0
  %v1445 = vadd.f32 %v1300, %v1444
  %v1446 = vpop.f32.mrb[0].mxu0
  %1447 = vmatprep.mubr.f32.mxu0 0.0
  %1448 = vmatmul.mubr.f32.gmra.mrb[0].mxu0 %v448
  %v1449 = vpop.f32.mrb[0].mxu0
  %v1450 = vadd.f32 %v1305, %v1449
  %v1451 = vpop.f32.mrb[0].mxu0
  %1452 = vmatprep.mubr.f32.mxu0 0.0
  %1453 = vmatmul.mubr.f32.gmra.mrb[0].mxu0 %v451
  %v1454 = vpop.f32.mrb[0].mxu0
  %v1455 = vadd.f32 %v1310, %v1454
  %v1456 = vpop.f32.mrb[0].mxu0
  %1457 = vmatprep.mubr.f32.mxu0 0.0
  %1458 = vmatmul.mubr.f32.gmra.mrb[0].mxu0 %v454
  %v1459 = vpop.f32.mrb[0].mxu0
  %v1460 = vadd.f32 %v1315, %v1459
  %v1461 = vpop.f32.mrb[0].mxu0
  %1462 = vmatprep.mubr.f32.mxu0 0.0
  %1463 = vmatmul.mubr.f32.gmra.mrb[0].mxu0 %v457
  %v1464 = vpop.f32.mrb[0].mxu0
  %v1465 = vadd.f32 %v1320, %v1464
  %v1466 = vpop.f32.mrb[0].mxu0
  %1467 = vmatprep.mubr.f32.mxu0 0.0
  %1468 = vmatmul.mubr.f32.gmra.mrb[0].mxu0 %v460
  %v1469 = vpop.f32.mrb[0].mxu0
  %v1470 = vadd.f32 %v1325, %v1469
  %v1471 = vpop.f32.mrb[0].mxu0
  %1472 = vmatprep.mubr.f32.mxu0 0.0
  %1473 = vmatmul.mubr.f32.gmra.mrb[0].mxu0 %v463
  %v1474 = vpop.f32.mrb[0].mxu0
  %v1475 = vadd.f32 %v1330, %v1474
  %v1476 = vpop.f32.mrb[0].mxu0
  %1477 = vmatprep.mubr.f32.mxu0 0.0
  %1478 = vmatmul.mubr.f32.gmra.mrb[0].mxu0 %v466
  %v1479 = vpop.f32.mrb[0].mxu0
  %v1480 = vadd.f32 %v1335, %v1479
  %v1481 = vpop.f32.mrb[0].mxu0
  %1482 = vdwg.mxu0
  %vm1483 = vcmask 400384
  %1484 = vst.msk [vmem:[%s2] sm:$0xff] %vm1483, %v1405
  %1485 = vst.msk [vmem:[%s2 + $0x8] sm:$0xff] %vm1483, %v1410
  %1486 = vst.msk [vmem:[%s2 + $0x10] sm:$0xff] %vm1483, %v1415
  %1487 = vst.msk [vmem:[%s2 + $0x18] sm:$0xff] %vm1483, %v1420
  %1488 = vst.msk [vmem:[%s2 + $0x20] sm:$0xff] %vm1483, %v1425
  %1489 = vst.msk [vmem:[%s2 + $0x28] sm:$0xff] %vm1483, %v1430
  %1490 = vst.msk [vmem:[%s2 + $0x30] sm:$0xff] %vm1483, %v1435
  %1491 = vst.msk [vmem:[%s2 + $0x38] sm:$0xff] %vm1483, %v1440
  %1492 = vst.msk [vmem:[%s2 + $0x40] sm:$0xff] %vm1483, %v1445
  %1493 = vst.msk [vmem:[%s2 + $0x48] sm:$0xff] %vm1483, %v1450
  %1494 = vst.msk [vmem:[%s2 + $0x50] sm:$0xff] %vm1483, %v1455
  %1495 = vst.msk [vmem:[%s2 + $0x58] sm:$0xff] %vm1483, %v1460
  %1496 = vst.msk [vmem:[%s2 + $0x60] sm:$0xff] %vm1483, %v1465
  %1497 = vst.msk [vmem:[%s2 + $0x68] sm:$0xff] %vm1483, %v1470
  %1498 = vst.msk [vmem:[%s2 + $0x70] sm:$0xff] %vm1483, %v1475
  %1499 = vst.msk [vmem:[%s2 + $0x78] sm:$0xff] %vm1483, %v1480
  // Predicated region
  $region10: #{tpu_custom_call.1} parent=0 // pred_check
    _
  $region11: #{tpu_custom_call.1} parent=0 // pred_check_branch
    %1501 = sbr.rel (0) target = $region13
  $region12: #{tpu_custom_call.1} parent=0 // pred_region
    _
  $region13: #{tpu_custom_call.1} parent=0 // pred_fallthru
    _
  // Predicated region
  $region14: #{tpu_custom_call.1} parent=0 // pred_check
    _
  $region15: #{tpu_custom_call.1} parent=0 // pred_check_branch
    %1503 = sbr.rel (0) target = $region17
  $region16: #{tpu_custom_call.1} parent=0 // pred_region
    _
  $region17: #{tpu_custom_call.1} parent=0 // pred_fallthru
    _

</llo_original>
